<compile_context>
chip_gen: v7x
topology: tpu7x:2x2x1
jax: 0.10.0
libtpu: 0.0.40
codegen_flags: <defaults>
</compile_context>

<pallas_src>
import functools

import numpy as np

import jax
import jax.numpy as jnp
from jax.experimental import pallas as pl
from jax.experimental.pallas import tpu as pltpu  # noqa: F401  (TPU backend)

LANE = 128  # channel axes are padded to one full vreg lane width


def _round_up(x, m):
    return ((x + m - 1) // m) * m


# ---------------------------------------------------------------------------
# Fused Pallas kernel (entire FPN forward)
# ---------------------------------------------------------------------------
def _bn_rows(x, gamma, beta, eps=1e-5):
    """BatchNorm2d (training-mode biased batch stats) over the row axis (f32)."""
    rows = x.shape[0]
    mean = jnp.sum(x, axis=0, keepdims=True) * (1.0 / rows)
    xc = x - mean
    var = jnp.sum(xc * xc, axis=0, keepdims=True) * (1.0 / rows)
    return xc * jax.lax.rsqrt(var + eps) * gamma + beta


def _fpn_fused_kernel(x1_ref, w1_ref, g1_ref, b1_ref,
                      s2_ref, w2_ref, g2_ref, b2_ref,
                      wf_ref, out_ref, *, rows2):
    # ---- block 1: fused (1x1 ∘ 3x3 stride3 pad1) conv as ONE im2col matmul,
    #      taps packed along K; accumulation stays inside the MXU ------------
    acc1 = jnp.dot(x1_ref[...], w1_ref[...],
                   preferred_element_type=jnp.float32)        # (rows1,128) f32
    y1 = _bn_rows(acc1, g1_ref[...], b1_ref[...])             # BN1, f32
    y1b = y1.astype(jnp.bfloat16)

    # ---- block 2: fused conv via ONE stacked tap-selection matmul ----------
    # p_all[t*rows2 + r] = y1 row feeding tap t of output pixel r (0 if the
    # tap falls in the zero-padding).  Single M=9*rows2 MXU push instead of
    # nine <7%-occupancy selection matmuls.
    p_all = jnp.dot(s2_ref[...], y1b,
                    preferred_element_type=jnp.float32)       # (9*rows2,128) f32
    p_all = p_all.reshape(9, rows2, LANE)                     # tile-aligned split
    acc2 = jnp.zeros((rows2, LANE), jnp.float32)
    for t in range(9):                                        # 9 small fused-weight dots
        acc2 = acc2 + jnp.dot(p_all[t].astype(jnp.bfloat16), w2_ref[t],
                              preferred_element_type=jnp.float32)
    y2 = _bn_rows(acc2, g2_ref[...], b2_ref[...])             # BN2, f32

    # ---- final 1x1 conv (lane-dense 128-wide store) -------------------------
    out_ref[...] = jnp.dot(y2.astype(jnp.bfloat16), wf_ref[...],
                           preferred_element_type=jnp.float32)


def _full_spec(shape):
    zeros = (0,) * len(shape)
    return pl.BlockSpec(shape, lambda: zeros)


# ---------------------------------------------------------------------------
# Wrapper-side layout helpers (cheap, once per call; fused by XLA)
# ---------------------------------------------------------------------------
def _space_to_depth_k_major(x_nchw, k_pad):
    """(N,C,H,W) -> bf16 (N*Ho*Wo, k_pad): per output pixel of the stride-3
    pad-1 3x3 conv, the 9 taps concatenated along K as (ky,kx,C), zero-padded
    to k_pad columns."""
    N, C, H, W = x_nchw.shape
    Ho = (H + 2 - 3) // 3 + 1
    Wo = (W + 2 - 3) // 3 + 1
    pad_h = max(0, 3 * Ho - (H + 1))
    pad_w = max(0, 3 * Wo - (W + 1))
    xp = jnp.pad(x_nchw, ((0, 0), (0, 0), (1, pad_h), (1, pad_w)))
    xp = xp[:, :, :3 * Ho, :3 * Wo]
    xp = xp.reshape(N, C, Ho, 3, Wo, 3)
    xp = xp.transpose(0, 2, 4, 3, 5, 1)                   # (N,oy,ox,ky,kx,C)
    x1 = xp.reshape(N * Ho * Wo, 9 * C)
    x1 = jnp.pad(x1, ((0, 0), (0, k_pad - 9 * C))).astype(jnp.bfloat16)
    return x1, Ho, Wo


def _tap_selection_stacked(n, h, w, stride=3, pad=1, k=3):
    """0/1 matrix S (9*rows_out, rows_in): row t*rows_out + r picks the tap-t
    input pixel of output position r (all taps stacked -> ONE selection dot)."""
    ho = (h + 2 * pad - k) // stride + 1
    wo = (w + 2 * pad - k) // stride + 1
    rows_in, rows_out = n * h * w, n * ho * wo
    S = np.zeros((k * k * rows_out, rows_in), np.float32)
    for ky in range(k):
        for kx in range(k):
            t = ky * k + kx
            for b in range(n):
                for py in range(ho):
                    for px in range(wo):
                        iy = stride * py + ky - pad
                        ix = stride * px + kx - pad
                        if 0 <= iy < h and 0 <= ix < w:
                            S[t * rows_out + b * ho * wo + py * wo + px,
                              b * h * w + iy * w + ix] = 1.0
    return jnp.asarray(S, dtype=jnp.bfloat16), ho, wo


# ---------------------------------------------------------------------------
# Parameters (PyTorch-equivalent init; 1x1 folded into 3x3 per-tap weights,
# pre-padded / K-stacked, bf16 MXU operands)
# ---------------------------------------------------------------------------
def _uniform(key, shape, fan_in):
    # PyTorch Conv2d default kaiming_uniform(a=sqrt(5)) -> U(-1/sqrt(fan), 1/sqrt(fan))
    bound = 1.0 / float(np.sqrt(fan_in))
    return jax.random.uniform(key, shape, jnp.float32, -bound, bound)


def _fused_block_weights(key, in_ch, out_ch):
    """FPN_block weights with Conv1 (1x1) folded into Conv3 (3x3) per tap."""
    k1, k2 = jax.random.split(key)
    w1 = _uniform(k1, (in_ch, out_ch), in_ch)              # Conv1: fan_in = in_ch
    w3 = _uniform(k2, (9, out_ch, out_ch), 9 * out_ch)     # Conv3: fan_in = 9*out_ch
    return jnp.einsum("ic,tcd->tid", w1, w3)               # (9, in_ch, out_ch)


def init_fpn(key, channel_lists):
    c1, c2, c3 = channel_lists  # scaled analogue of [128, 256, 512]
    k1, k2, k3 = jax.random.split(key, 3)

    # FPN.__init__: conv1 = FPN_block(c3 + c2, c2) — fused & K-stacked for the
    # single im2col matmul (K = 9*(c3+c2) rounded up to a 128 multiple).
    in1 = c3 + c2
    wf1 = _fused_block_weights(k1, in1, c2)                # (9, in1, c2)
    k1pad = _round_up(9 * in1, LANE)
    w1_stack = jnp.pad(wf1.reshape(9 * in1, c2),
                       ((0, k1pad - 9 * in1), (0, LANE - c2))).astype(jnp.bfloat16)

    # FPN.__init__: conv2 = FPN_block(c1 + c2, c1); see TODO(synk) at top —
    # input channels set to conv1's output (c2) so forward() chains.
    wf2 = _fused_block_weights(k2, c2, c1)                 # (9, c2, c1)
    w2_taps = jnp.pad(wf2, ((0, 0), (0, LANE - c2),
                            (0, LANE - c1))).astype(jnp.bfloat16)

    # FPN.__init__: conv3 = Conv2d(c1, 512-analogue, kernel_size=1, bias=False)
    w3f = _pad2 = jnp.pad(_uniform(k3, (c1, c3), c1),
                          ((0, LANE - c1), (0, LANE - c3))).astype(jnp.bfloat16)

    return {
        "w1_stack": w1_stack,                              # (k1pad, 128) bf16
        "bn1_gamma": jnp.ones((1, LANE), jnp.float32),
        "bn1_beta": jnp.zeros((1, LANE), jnp.float32),
        "w2_taps": w2_taps,                                # (9, 128, 128) bf16
        "bn2_gamma": jnp.ones((1, LANE), jnp.float32),
        "bn2_beta": jnp.zeros((1, LANE), jnp.float32),
        "w3": w3f,                                         # (128, 128) bf16
    }


# ---------------------------------------------------------------------------
# Forward
# ---------------------------------------------------------------------------
@functools.partial(jax.jit, static_argnames=("out_channels",))
def fpn_forward(x_nchw, params, *, out_channels):
    N = x_nchw.shape[0]
    k_pad = params["w1_stack"].shape[0]

    # Block-1 im2col (taps along K) relayout — one cheap XLA copy; only ~1.19x
    # K padding instead of the old 5.3x channel padding of the input DMA.
    x1, Ho1, Wo1 = _space_to_depth_k_major(x_nchw.astype(jnp.float32), k_pad)
    rows1 = N * Ho1 * Wo1

    # Block-2 stacked tap-selection constant (trace-time numpy, toy-size only;
    # see production TODO at the top).
    s2, Ho2, Wo2 = _tap_selection_stacked(N, Ho1, Wo1)
    rows2 = N * Ho2 * Wo2

    args = (x1, params["w1_stack"], params["bn1_gamma"], params["bn1_beta"],
            s2, params["w2_taps"], params["bn2_gamma"], params["bn2_beta"],
            params["w3"])

    kernel = functools.partial(_fpn_fused_kernel, rows2=rows2)
    out = pl.pallas_call(
        kernel,
        out_shape=jax.ShapeDtypeStruct((rows2, LANE), jnp.float32),
        in_specs=[_full_spec(a.shape) for a in args],
        out_specs=_full_spec((rows2, LANE)),
    )(*args)

    # Un-pad channels and return NCHW to mirror PyTorch.
    out = out[:, :out_channels].reshape(N, Ho2, Wo2, out_channels)
    return out.transpose(0, 3, 1, 2)


# ---------------------------------------------------------------------------
if __name__ == "__main__":
    key = jax.random.PRNGKey(0)
    kx, kp = jax.random.split(key)

    # Channels scaled 32x down from [128, 256, 512] -> [4, 8, 16].
    channel_lists = [4, 8, 16]
    in_channels = channel_lists[-1] + channel_lists[-2]   # 24 (= 512+256 scaled)

    # x: (N=2, C=24, H=18, W=18) NCHW, mirroring the PyTorch input convention.
    x = jax.random.normal(kx, (2, in_channels, 18, 18), jnp.float32)
    params = init_fpn(kp, channel_lists)

    out = fpn_forward(x, params, out_channels=channel_lists[-1])
    out = jax.block_until_ready(out)

    # Shape check: 18 --(s3,p1)--> 6 --(s3,p1)--> 2; final 1x1 -> 16 channels.
    assert out.shape == (2, channel_lists[-1], 2, 2), out.shape
    assert out.dtype == jnp.float32
    assert bool(jnp.all(jnp.isfinite(out)))

    print("KERNEL_OK")
</pallas_src>

<mosaic_0001>
module attributes {stable_mosaic.version = 11 : i64} {
  func.func @_fpn_fused_kernel(%arg0: memref<72x256xbf16, #tpu.memory_space<vmem>>, %arg1: memref<256x128xbf16, #tpu.memory_space<vmem>>, %arg2: memref<1x128xf32, #tpu.memory_space<vmem>>, %arg3: memref<1x128xf32, #tpu.memory_space<vmem>>, %arg4: memref<72x72xbf16, #tpu.memory_space<vmem>>, %arg5: memref<9x128x128xbf16, #tpu.memory_space<vmem>>, %arg6: memref<1x128xf32, #tpu.memory_space<vmem>>, %arg7: memref<1x128xf32, #tpu.memory_space<vmem>>, %arg8: memref<128x128xbf16, #tpu.memory_space<vmem>>, %arg9: memref<8x128xf32, #tpu.memory_space<vmem>>) attributes {dimension_semantics = [], scalar_prefetch = 0 : i64, scratch_operands = 0 : i64, tpu.core_type = #tpu.core_type<tc>} {
    %c0 = arith.constant 0 : index
    %c0_0 = arith.constant 0 : index
    %0 = vector.load %arg0[%c0, %c0_0] : memref<72x256xbf16, #tpu.memory_space<vmem>>, vector<72x256xbf16>
    %c0_1 = arith.constant 0 : index
    %c0_2 = arith.constant 0 : index
    %1 = vector.load %arg1[%c0_1, %c0_2] : memref<256x128xbf16, #tpu.memory_space<vmem>>, vector<256x128xbf16>
    %cst = arith.constant dense<0.000000e+00> : vector<72x128xf32>
    %2 = tpu.matmul %0, %1, %cst {dimension_numbers = #tpu.dot_dimension_numbers<[1], [0], [0], [1], [0, 0, 1, 1], [], []>} : vector<72x256xbf16>, vector<256x128xbf16>, vector<72x128xf32> -> vector<72x128xf32>
    %c0_3 = arith.constant 0 : index
    %c0_4 = arith.constant 0 : index
    %3 = vector.load %arg2[%c0_3, %c0_4] : memref<1x128xf32, #tpu.memory_space<vmem>>, vector<1x128xf32>
    %c0_5 = arith.constant 0 : index
    %c0_6 = arith.constant 0 : index
    %4 = vector.load %arg3[%c0_5, %c0_6] : memref<1x128xf32, #tpu.memory_space<vmem>>, vector<1x128xf32>
    %cst_7 = arith.constant dense<0.000000e+00> : vector<128xf32>
    %5 = vector.multi_reduction <add>, %2, %cst_7 [0] : vector<72x128xf32> to vector<128xf32>
    %6 = vector.shape_cast %5 : vector<128xf32> to vector<1x128xf32>
    %cst_8 = arith.constant 0.013888889 : f32
    %7 = vector.broadcast %cst_8 : f32 to vector<1x128xf32>
    %8 = arith.mulf %6, %7 : vector<1x128xf32>
    %9 = vector.broadcast %8 : vector<1x128xf32> to vector<72x128xf32>
    %10 = arith.subf %2, %9 : vector<72x128xf32>
    %11 = arith.mulf %10, %10 : vector<72x128xf32>
    %cst_9 = arith.constant dense<0.000000e+00> : vector<128xf32>
    %12 = vector.multi_reduction <add>, %11, %cst_9 [0] : vector<72x128xf32> to vector<128xf32>
    %13 = vector.shape_cast %12 : vector<128xf32> to vector<1x128xf32>
    %cst_10 = arith.constant 0.013888889 : f32
    %14 = vector.broadcast %cst_10 : f32 to vector<1x128xf32>
    %15 = arith.mulf %13, %14 : vector<1x128xf32>
    %cst_11 = arith.constant 9.99999974E-6 : f32
    %16 = vector.broadcast %cst_11 : f32 to vector<1x128xf32>
    %17 = arith.addf %15, %16 : vector<1x128xf32>
    %18 = math.rsqrt %17 : vector<1x128xf32>
    %19 = vector.broadcast %18 : vector<1x128xf32> to vector<72x128xf32>
    %20 = arith.mulf %10, %19 : vector<72x128xf32>
    %21 = vector.broadcast %3 : vector<1x128xf32> to vector<72x128xf32>
    %22 = arith.mulf %20, %21 : vector<72x128xf32>
    %23 = vector.broadcast %4 : vector<1x128xf32> to vector<72x128xf32>
    %24 = arith.addf %22, %23 : vector<72x128xf32>
    %25 = arith.truncf %24 : vector<72x128xf32> to vector<72x128xbf16>
    %c0_12 = arith.constant 0 : index
    %c0_13 = arith.constant 0 : index
    %26 = vector.load %arg4[%c0_12, %c0_13] : memref<72x72xbf16, #tpu.memory_space<vmem>>, vector<72x72xbf16>
    %cst_14 = arith.constant dense<0.000000e+00> : vector<72x128xf32>
    %27 = tpu.matmul %26, %25, %cst_14 {dimension_numbers = #tpu.dot_dimension_numbers<[1], [0], [0], [1], [0, 0, 1, 1], [], []>} : vector<72x72xbf16>, vector<72x128xbf16>, vector<72x128xf32> -> vector<72x128xf32>
    %28 = vector.shape_cast %27 : vector<72x128xf32> to vector<9x8x128xf32>
    %cst_15 = arith.constant 0.000000e+00 : f32
    %29 = vector.broadcast %cst_15 : f32 to vector<8x128xf32>
    %30 = vector.extract_strided_slice %28 {offsets = [0, 0, 0], sizes = [1, 8, 128], strides = [1, 1, 1]} : vector<9x8x128xf32> to vector<1x8x128xf32>
    %31 = vector.shape_cast %30 : vector<1x8x128xf32> to vector<8x128xf32>
    %32 = arith.truncf %31 : vector<8x128xf32> to vector<8x128xbf16>
    %c0_16 = arith.constant 0 : index
    %c0_17 = arith.constant 0 : index
    %c0_18 = arith.constant 0 : index
    %33 = vector.load %arg5[%c0_16, %c0_17, %c0_18] : memref<9x128x128xbf16, #tpu.memory_space<vmem>>, vector<1x128x128xbf16>
    %34 = vector.shape_cast %33 : vector<1x128x128xbf16> to vector<128x128xbf16>
    %cst_19 = arith.constant dense<0.000000e+00> : vector<8x128xf32>
    %35 = tpu.matmul %32, %34, %cst_19 {dimension_numbers = #tpu.dot_dimension_numbers<[1], [0], [0], [1], [0, 0, 1, 1], [], []>} : vector<8x128xbf16>, vector<128x128xbf16>, vector<8x128xf32> -> vector<8x128xf32>
    %36 = arith.addf %29, %35 : vector<8x128xf32>
    %37 = vector.extract_strided_slice %28 {offsets = [1, 0, 0], sizes = [1, 8, 128], strides = [1, 1, 1]} : vector<9x8x128xf32> to vector<1x8x128xf32>
    %38 = vector.shape_cast %37 : vector<1x8x128xf32> to vector<8x128xf32>
    %39 = arith.truncf %38 : vector<8x128xf32> to vector<8x128xbf16>
    %c1 = arith.constant 1 : index
    %c0_20 = arith.constant 0 : index
    %c0_21 = arith.constant 0 : index
    %40 = vector.load %arg5[%c1, %c0_20, %c0_21] : memref<9x128x128xbf16, #tpu.memory_space<vmem>>, vector<1x128x128xbf16>
    %41 = vector.shape_cast %40 : vector<1x128x128xbf16> to vector<128x128xbf16>
    %cst_22 = arith.constant dense<0.000000e+00> : vector<8x128xf32>
    %42 = tpu.matmul %39, %41, %cst_22 {dimension_numbers = #tpu.dot_dimension_numbers<[1], [0], [0], [1], [0, 0, 1, 1], [], []>} : vector<8x128xbf16>, vector<128x128xbf16>, vector<8x128xf32> -> vector<8x128xf32>
    %43 = arith.addf %36, %42 : vector<8x128xf32>
    %44 = vector.extract_strided_slice %28 {offsets = [2, 0, 0], sizes = [1, 8, 128], strides = [1, 1, 1]} : vector<9x8x128xf32> to vector<1x8x128xf32>
    %45 = vector.shape_cast %44 : vector<1x8x128xf32> to vector<8x128xf32>
    %46 = arith.truncf %45 : vector<8x128xf32> to vector<8x128xbf16>
    %c2 = arith.constant 2 : index
    %c0_23 = arith.constant 0 : index
    %c0_24 = arith.constant 0 : index
    %47 = vector.load %arg5[%c2, %c0_23, %c0_24] : memref<9x128x128xbf16, #tpu.memory_space<vmem>>, vector<1x128x128xbf16>
    %48 = vector.shape_cast %47 : vector<1x128x128xbf16> to vector<128x128xbf16>
    %cst_25 = arith.constant dense<0.000000e+00> : vector<8x128xf32>
    %49 = tpu.matmul %46, %48, %cst_25 {dimension_numbers = #tpu.dot_dimension_numbers<[1], [0], [0], [1], [0, 0, 1, 1], [], []>} : vector<8x128xbf16>, vector<128x128xbf16>, vector<8x128xf32> -> vector<8x128xf32>
    %50 = arith.addf %43, %49 : vector<8x128xf32>
    %51 = vector.extract_strided_slice %28 {offsets = [3, 0, 0], sizes = [1, 8, 128], strides = [1, 1, 1]} : vector<9x8x128xf32> to vector<1x8x128xf32>
    %52 = vector.shape_cast %51 : vector<1x8x128xf32> to vector<8x128xf32>
    %53 = arith.truncf %52 : vector<8x128xf32> to vector<8x128xbf16>
    %c3 = arith.constant 3 : index
    %c0_26 = arith.constant 0 : index
    %c0_27 = arith.constant 0 : index
    %54 = vector.load %arg5[%c3, %c0_26, %c0_27] : memref<9x128x128xbf16, #tpu.memory_space<vmem>>, vector<1x128x128xbf16>
    %55 = vector.shape_cast %54 : vector<1x128x128xbf16> to vector<128x128xbf16>
    %cst_28 = arith.constant dense<0.000000e+00> : vector<8x128xf32>
    %56 = tpu.matmul %53, %55, %cst_28 {dimension_numbers = #tpu.dot_dimension_numbers<[1], [0], [0], [1], [0, 0, 1, 1], [], []>} : vector<8x128xbf16>, vector<128x128xbf16>, vector<8x128xf32> -> vector<8x128xf32>
    %57 = arith.addf %50, %56 : vector<8x128xf32>
    %58 = vector.extract_strided_slice %28 {offsets = [4, 0, 0], sizes = [1, 8, 128], strides = [1, 1, 1]} : vector<9x8x128xf32> to vector<1x8x128xf32>
    %59 = vector.shape_cast %58 : vector<1x8x128xf32> to vector<8x128xf32>
    %60 = arith.truncf %59 : vector<8x128xf32> to vector<8x128xbf16>
    %c4 = arith.constant 4 : index
    %c0_29 = arith.constant 0 : index
    %c0_30 = arith.constant 0 : index
    %61 = vector.load %arg5[%c4, %c0_29, %c0_30] : memref<9x128x128xbf16, #tpu.memory_space<vmem>>, vector<1x128x128xbf16>
    %62 = vector.shape_cast %61 : vector<1x128x128xbf16> to vector<128x128xbf16>
    %cst_31 = arith.constant dense<0.000000e+00> : vector<8x128xf32>
    %63 = tpu.matmul %60, %62, %cst_31 {dimension_numbers = #tpu.dot_dimension_numbers<[1], [0], [0], [1], [0, 0, 1, 1], [], []>} : vector<8x128xbf16>, vector<128x128xbf16>, vector<8x128xf32> -> vector<8x128xf32>
    %64 = arith.addf %57, %63 : vector<8x128xf32>
    %65 = vector.extract_strided_slice %28 {offsets = [5, 0, 0], sizes = [1, 8, 128], strides = [1, 1, 1]} : vector<9x8x128xf32> to vector<1x8x128xf32>
    %66 = vector.shape_cast %65 : vector<1x8x128xf32> to vector<8x128xf32>
    %67 = arith.truncf %66 : vector<8x128xf32> to vector<8x128xbf16>
    %c5 = arith.constant 5 : index
    %c0_32 = arith.constant 0 : index
    %c0_33 = arith.constant 0 : index
    %68 = vector.load %arg5[%c5, %c0_32, %c0_33] : memref<9x128x128xbf16, #tpu.memory_space<vmem>>, vector<1x128x128xbf16>
    %69 = vector.shape_cast %68 : vector<1x128x128xbf16> to vector<128x128xbf16>
    %cst_34 = arith.constant dense<0.000000e+00> : vector<8x128xf32>
    %70 = tpu.matmul %67, %69, %cst_34 {dimension_numbers = #tpu.dot_dimension_numbers<[1], [0], [0], [1], [0, 0, 1, 1], [], []>} : vector<8x128xbf16>, vector<128x128xbf16>, vector<8x128xf32> -> vector<8x128xf32>
    %71 = arith.addf %64, %70 : vector<8x128xf32>
    %72 = vector.extract_strided_slice %28 {offsets = [6, 0, 0], sizes = [1, 8, 128], strides = [1, 1, 1]} : vector<9x8x128xf32> to vector<1x8x128xf32>
    %73 = vector.shape_cast %72 : vector<1x8x128xf32> to vector<8x128xf32>
    %74 = arith.truncf %73 : vector<8x128xf32> to vector<8x128xbf16>
    %c6 = arith.constant 6 : index
    %c0_35 = arith.constant 0 : index
    %c0_36 = arith.constant 0 : index
    %75 = vector.load %arg5[%c6, %c0_35, %c0_36] : memref<9x128x128xbf16, #tpu.memory_space<vmem>>, vector<1x128x128xbf16>
    %76 = vector.shape_cast %75 : vector<1x128x128xbf16> to vector<128x128xbf16>
    %cst_37 = arith.constant dense<0.000000e+00> : vector<8x128xf32>
    %77 = tpu.matmul %74, %76, %cst_37 {dimension_numbers = #tpu.dot_dimension_numbers<[1], [0], [0], [1], [0, 0, 1, 1], [], []>} : vector<8x128xbf16>, vector<128x128xbf16>, vector<8x128xf32> -> vector<8x128xf32>
    %78 = arith.addf %71, %77 : vector<8x128xf32>
    %79 = vector.extract_strided_slice %28 {offsets = [7, 0, 0], sizes = [1, 8, 128], strides = [1, 1, 1]} : vector<9x8x128xf32> to vector<1x8x128xf32>
    %80 = vector.shape_cast %79 : vector<1x8x128xf32> to vector<8x128xf32>
    %81 = arith.truncf %80 : vector<8x128xf32> to vector<8x128xbf16>
    %c7 = arith.constant 7 : index
    %c0_38 = arith.constant 0 : index
    %c0_39 = arith.constant 0 : index
    %82 = vector.load %arg5[%c7, %c0_38, %c0_39] : memref<9x128x128xbf16, #tpu.memory_space<vmem>>, vector<1x128x128xbf16>
    %83 = vector.shape_cast %82 : vector<1x128x128xbf16> to vector<128x128xbf16>
    %cst_40 = arith.constant dense<0.000000e+00> : vector<8x128xf32>
    %84 = tpu.matmul %81, %83, %cst_40 {dimension_numbers = #tpu.dot_dimension_numbers<[1], [0], [0], [1], [0, 0, 1, 1], [], []>} : vector<8x128xbf16>, vector<128x128xbf16>, vector<8x128xf32> -> vector<8x128xf32>
    %85 = arith.addf %78, %84 : vector<8x128xf32>
    %86 = vector.extract_strided_slice %28 {offsets = [8, 0, 0], sizes = [1, 8, 128], strides = [1, 1, 1]} : vector<9x8x128xf32> to vector<1x8x128xf32>
    %87 = vector.shape_cast %86 : vector<1x8x128xf32> to vector<8x128xf32>
    %88 = arith.truncf %87 : vector<8x128xf32> to vector<8x128xbf16>
    %c8 = arith.constant 8 : index
    %c0_41 = arith.constant 0 : index
    %c0_42 = arith.constant 0 : index
    %89 = vector.load %arg5[%c8, %c0_41, %c0_42] : memref<9x128x128xbf16, #tpu.memory_space<vmem>>, vector<1x128x128xbf16>
    %90 = vector.shape_cast %89 : vector<1x128x128xbf16> to vector<128x128xbf16>
    %cst_43 = arith.constant dense<0.000000e+00> : vector<8x128xf32>
    %91 = tpu.matmul %88, %90, %cst_43 {dimension_numbers = #tpu.dot_dimension_numbers<[1], [0], [0], [1], [0, 0, 1, 1], [], []>} : vector<8x128xbf16>, vector<128x128xbf16>, vector<8x128xf32> -> vector<8x128xf32>
    %92 = arith.addf %85, %91 : vector<8x128xf32>
    %c0_44 = arith.constant 0 : index
    %c0_45 = arith.constant 0 : index
    %93 = vector.load %arg6[%c0_44, %c0_45] : memref<1x128xf32, #tpu.memory_space<vmem>>, vector<1x128xf32>
    %c0_46 = arith.constant 0 : index
    %c0_47 = arith.constant 0 : index
    %94 = vector.load %arg7[%c0_46, %c0_47] : memref<1x128xf32, #tpu.memory_space<vmem>>, vector<1x128xf32>
    %cst_48 = arith.constant dense<0.000000e+00> : vector<128xf32>
    %95 = vector.multi_reduction <add>, %92, %cst_48 [0] : vector<8x128xf32> to vector<128xf32>
    %96 = vector.shape_cast %95 : vector<128xf32> to vector<1x128xf32>
    %cst_49 = arith.constant 1.250000e-01 : f32
    %97 = vector.broadcast %cst_49 : f32 to vector<1x128xf32>
    %98 = arith.mulf %96, %97 : vector<1x128xf32>
    %99 = vector.broadcast %98 : vector<1x128xf32> to vector<8x128xf32>
    %100 = arith.subf %92, %99 : vector<8x128xf32>
    %101 = arith.mulf %100, %100 : vector<8x128xf32>
    %cst_50 = arith.constant dense<0.000000e+00> : vector<128xf32>
    %102 = vector.multi_reduction <add>, %101, %cst_50 [0] : vector<8x128xf32> to vector<128xf32>
    %103 = vector.shape_cast %102 : vector<128xf32> to vector<1x128xf32>
    %cst_51 = arith.constant 1.250000e-01 : f32
    %104 = vector.broadcast %cst_51 : f32 to vector<1x128xf32>
    %105 = arith.mulf %103, %104 : vector<1x128xf32>
    %cst_52 = arith.constant 9.99999974E-6 : f32
    %106 = vector.broadcast %cst_52 : f32 to vector<1x128xf32>
    %107 = arith.addf %105, %106 : vector<1x128xf32>
    %108 = math.rsqrt %107 : vector<1x128xf32>
    %109 = vector.broadcast %108 : vector<1x128xf32> to vector<8x128xf32>
    %110 = arith.mulf %100, %109 : vector<8x128xf32>
    %111 = vector.broadcast %93 : vector<1x128xf32> to vector<8x128xf32>
    %112 = arith.mulf %110, %111 : vector<8x128xf32>
    %113 = vector.broadcast %94 : vector<1x128xf32> to vector<8x128xf32>
    %114 = arith.addf %112, %113 : vector<8x128xf32>
    %115 = arith.truncf %114 : vector<8x128xf32> to vector<8x128xbf16>
    %c0_53 = arith.constant 0 : index
    %c0_54 = arith.constant 0 : index
    %116 = vector.load %arg8[%c0_53, %c0_54] : memref<128x128xbf16, #tpu.memory_space<vmem>>, vector<128x128xbf16>
    %cst_55 = arith.constant dense<0.000000e+00> : vector<8x128xf32>
    %117 = tpu.matmul %115, %116, %cst_55 {dimension_numbers = #tpu.dot_dimension_numbers<[1], [0], [0], [1], [0, 0, 1, 1], [], []>} : vector<8x128xbf16>, vector<128x128xbf16>, vector<8x128xf32> -> vector<8x128xf32>
    %c0_56 = arith.constant 0 : index
    %c0_57 = arith.constant 0 : index
    %118 = vector.load %arg9[%c0_56, %c0_57] : memref<8x128xf32, #tpu.memory_space<vmem>>, vector<8x128xf32>
    tpu.vector_store %arg9[%c0_56, %c0_57], %117 {strides = array<i32>} : memref<8x128xf32, #tpu.memory_space<vmem>>, vector<8x128xf32>,
    return
  }
}

</mosaic_0001>

<llo_original>
// kernel: fpn_forward.1
$region0: #{fpn_forward.1}
  #allocation0 [shape = 'u32[]', space=smem, size = 0x4, offset = 0x4, fixed_abs, tag = 'smem constant byte address 0x4 - core index']
  #allocation1 [shape = 'u32[144,128]{1,0:T(1,128)}', space=vmem, size = 0x12000, scoped, tag = 'internal scratch']
  %s0 = inlined_call_operand.vmem [shape: bf16[72,256], index: 0, kind: input, shape index: {}]
  %s1 = inlined_call_operand.vmem [shape: bf16[256,128], index: 1, kind: input, shape index: {}]
  %s2 = inlined_call_operand.vmem [shape: f32[1,128], index: 2, kind: input, shape index: {}]
  %s3 = inlined_call_operand.vmem [shape: f32[1,128], index: 3, kind: input, shape index: {}]
  %s4 = inlined_call_operand.vmem [shape: bf16[72,72], index: 4, kind: input, shape index: {}]
  %s5 = inlined_call_operand.vmem [shape: bf16[9,128,128], index: 5, kind: input, shape index: {}]
  %s6 = inlined_call_operand.vmem [shape: f32[1,128], index: 6, kind: input, shape index: {}]
  %s7 = inlined_call_operand.vmem [shape: f32[1,128], index: 7, kind: input, shape index: {}]
  %s8 = inlined_call_operand.vmem [shape: bf16[128,128], index: 8, kind: input, shape index: {}]
  %s9 = inlined_call_operand.hbm [shape: f32[8,128], index: 9, kind: output, shape index: {}]
  %s10 = sld [smem:[#allocation0]]
  $region46: #{fpn_forward.1} parent=0
    _
  %s12 = ssub.s32 1, %s10
  %s13 = scalar_select 0, %s12, %s10
  $region1: #{fpn_forward.1} parent=0
    #allocation2 [shape = 'u8[4096]{0}', space=vmem, size = 0x1000, scoped, tag = 'output window, operand 0, single buffered']
    #allocation3 [shape = 's32[1]{0}', space=sflag, size = 0x4, scoped, tag = 'scoped memory for fpn_forward.1']
    %14 = vsyncpa [#allocation3], 0
    // Predicated region
    $region2: #{fpn_forward.1} parent=1 // pred_check
      _
    $region3: #{fpn_forward.1} parent=1 // pred_check_branch
      %16 = sbr.rel (0) target = $region5
    $region4: #{fpn_forward.1} parent=1 // pred_region
      _
    $region5: #{fpn_forward.1} parent=1 // pred_fallthru
      _
    // Predicated region
    $region6: #{fpn_forward.1} parent=1 // pred_check
      _
    $region7: #{fpn_forward.1} parent=1 // pred_check_branch
      %18 = sbr.rel (0) target = $region9
    $region8: #{fpn_forward.1} parent=1 // pred_region
      _
    $region9: #{fpn_forward.1} parent=1 // pred_fallthru
      _
    // Predicated region
    $region10: #{fpn_forward.1} parent=1 // pred_check
      _
    $region11: #{fpn_forward.1} parent=1 // pred_check_branch
      %20 = sbr.rel (0) target = $region13
    $region12: #{fpn_forward.1} parent=1 // pred_region
      _
    $region13: #{fpn_forward.1} parent=1 // pred_fallthru
      _
    // Predicated region
    $region14: #{fpn_forward.1} parent=1 // pred_check
      _
    $region15: #{fpn_forward.1} parent=1 // pred_check_branch
      %22 = sbr.rel (0) target = $region17
    $region16: #{fpn_forward.1} parent=1 // pred_region
      _
    $region17: #{fpn_forward.1} parent=1 // pred_fallthru
      _
    // Predicated region
    $region18: #{fpn_forward.1} parent=1 // pred_check
      _
    $region19: #{fpn_forward.1} parent=1 // pred_check_branch
      %24 = sbr.rel (0) target = $region21
    $region20: #{fpn_forward.1} parent=1 // pred_region
      _
    $region21: #{fpn_forward.1} parent=1 // pred_fallthru
      _
    // Predicated region
    $region22: #{fpn_forward.1} parent=1 // pred_check
      _
    $region23: #{fpn_forward.1} parent=1 // pred_check_branch
      %26 = sbr.rel (0) target = $region25
    $region24: #{fpn_forward.1} parent=1 // pred_region
      _
    $region25: #{fpn_forward.1} parent=1 // pred_fallthru
      _
    // Predicated region
    $region26: #{fpn_forward.1} parent=1 // pred_check
      _
    $region27: #{fpn_forward.1} parent=1 // pred_check_branch
      %28 = sbr.rel (0) target = $region29
    $region28: #{fpn_forward.1} parent=1 // pred_region
      _
    $region29: #{fpn_forward.1} parent=1 // pred_fallthru
      _
    // Predicated region
    $region30: #{fpn_forward.1} parent=1 // pred_check
      _
    $region31: #{fpn_forward.1} parent=1 // pred_check_branch
      %30 = sbr.rel (0) target = $region33
    $region32: #{fpn_forward.1} parent=1 // pred_region
      _
    $region33: #{fpn_forward.1} parent=1 // pred_fallthru
      _
    // Predicated region
    $region34: #{fpn_forward.1} parent=1 // pred_check
      _
    $region35: #{fpn_forward.1} parent=1 // pred_check_branch
      %32 = sbr.rel (0) target = $region37
    $region36: #{fpn_forward.1} parent=1 // pred_region
      _
    $region37: #{fpn_forward.1} parent=1 // pred_fallthru
      _
    %v34 = vld [vmem:[%s0] sm:$0xff]
    %v35 = vld [vmem:[%s0 + $0x8] sm:$0xff]
    %v36 = vld [vmem:[%s0 + $0x10] sm:$0xff]
    %v37 = vld [vmem:[%s0 + $0x18] sm:$0xff]
    %v38 = vld [vmem:[%s0 + $0x20] sm:$0xff]
    %v39 = vld [vmem:[%s0 + $0x28] sm:$0xff]
    %v40 = vld [vmem:[%s0 + $0x30] sm:$0xff]
    %v41 = vld [vmem:[%s0 + $0x38] sm:$0xff]
    %v42 = vld [vmem:[%s0 + $0x40] sm:$0xff]
    %v43 = vld [vmem:[%s1] sm:$0xf]
    %v44 = vld [vmem:[%s1 + $0x4] sm:$0xf]
    %v45 = vld [vmem:[%s1 + $0x8] sm:$0xf]
    %v46 = vld [vmem:[%s1 + $0xc] sm:$0xf]
    %v47 = vld [vmem:[%s1 + $0x10] sm:$0xf]
    %v48 = vld [vmem:[%s1 + $0x14] sm:$0xf]
    %v49 = vld [vmem:[%s1 + $0x18] sm:$0xf]
    %v50 = vld [vmem:[%s1 + $0x1c] sm:$0xf]
    %v51 = vld [vmem:[%s1 + $0x20] sm:$0xf]
    %v52 = vld [vmem:[%s1 + $0x24] sm:$0xf]
    %v53 = vld [vmem:[%s1 + $0x28] sm:$0xf]
    %v54 = vld [vmem:[%s1 + $0x2c] sm:$0xf]
    %v55 = vld [vmem:[%s1 + $0x30] sm:$0xf]
    %v56 = vld [vmem:[%s1 + $0x34] sm:$0xf]
    %v57 = vld [vmem:[%s1 + $0x38] sm:$0xf]
    %v58 = vld [vmem:[%s1 + $0x3c] sm:$0xf]
    %v59 = vld [vmem:[%s1 + $0x40] sm:$0xf]
    %v60 = vld [vmem:[%s1 + $0x44] sm:$0xf]
    %v61 = vld [vmem:[%s1 + $0x48] sm:$0xf]
    %v62 = vld [vmem:[%s1 + $0x4c] sm:$0xf]
    %v63 = vld [vmem:[%s1 + $0x50] sm:$0xf]
    %v64 = vld [vmem:[%s1 + $0x54] sm:$0xf]
    %v65 = vld [vmem:[%s1 + $0x58] sm:$0xf]
    %v66 = vld [vmem:[%s1 + $0x5c] sm:$0xf]
    %v67 = vld [vmem:[%s1 + $0x60] sm:$0xf]
    %v68 = vld [vmem:[%s1 + $0x64] sm:$0xf]
    %v69 = vld [vmem:[%s1 + $0x68] sm:$0xf]
    %v70 = vld [vmem:[%s1 + $0x6c] sm:$0xf]
    %v71 = vld [vmem:[%s1 + $0x70] sm:$0xf]
    %v72 = vld [vmem:[%s1 + $0x74] sm:$0xf]
    %v73 = vld [vmem:[%s1 + $0x78] sm:$0xf]
    %v74 = vld [vmem:[%s1 + $0x7c] sm:$0xf]
    %v84 = vunpack.c.l.b16 %v34
    %v85 = vunpack.c.h.b16 %v34
    %v86 = vunpack.c.l.b16 %v35
    %v87 = vunpack.c.h.b16 %v35
    %v88 = vunpack.c.l.b16 %v36
    %v89 = vunpack.c.h.b16 %v36
    %v90 = vunpack.c.l.b16 %v37
    %v91 = vunpack.c.h.b16 %v37
    %v92 = vunpack.c.l.b16 %v38
    %v93 = vunpack.c.h.b16 %v38
    %v94 = vunpack.c.l.b16 %v39
    %v95 = vunpack.c.h.b16 %v39
    %v96 = vunpack.c.l.b16 %v40
    %v97 = vunpack.c.h.b16 %v40
    %v98 = vunpack.c.l.b16 %v41
    %v99 = vunpack.c.h.b16 %v41
    %v100 = vunpack.c.l.b16 %v42
    %v101 = vunpack.c.h.b16 %v42
    %v102 = vpack.c.b16 %v86, %v84
    %v103 = vpack.c.b16 %v87, %v85
    %v104 = vpack.c.b16 %v90, %v88
    %v105 = vpack.c.b16 %v91, %v89
    %v106 = vpack.c.b16 %v94, %v92
    %v107 = vpack.c.b16 %v95, %v93
    %v108 = vpack.c.b16 %v98, %v96
    %v109 = vpack.c.b16 %v99, %v97
    %v110 = vpack.c.b16 %v100, %v100
    %v111 = vpack.c.b16 %v101, %v101
    %v154 = vunpack.c.l.b16 %v43
    %v155 = vunpack.c.l.b16 %v44
    %v156 = vunpack.c.l.b16 %v45
    %v157 = vunpack.c.l.b16 %v46
    %v158 = vunpack.c.l.b16 %v47
    %v159 = vunpack.c.l.b16 %v48
    %v160 = vunpack.c.l.b16 %v49
    %v161 = vunpack.c.l.b16 %v50
    %v162 = vunpack.c.l.b16 %v51
    %v163 = vunpack.c.l.b16 %v52
    %v164 = vunpack.c.l.b16 %v53
    %v165 = vunpack.c.l.b16 %v54
    %v166 = vunpack.c.l.b16 %v55
    %v167 = vunpack.c.l.b16 %v56
    %v168 = vunpack.c.l.b16 %v57
    %v169 = vunpack.c.l.b16 %v58
    %v170 = vunpack.c.l.b16 %v59
    %v171 = vunpack.c.l.b16 %v60
    %v172 = vunpack.c.l.b16 %v61
    %v173 = vunpack.c.l.b16 %v62
    %v174 = vunpack.c.l.b16 %v63
    %v175 = vunpack.c.l.b16 %v64
    %v176 = vunpack.c.l.b16 %v65
    %v177 = vunpack.c.l.b16 %v66
    %v178 = vunpack.c.l.b16 %v67
    %v179 = vunpack.c.l.b16 %v68
    %v180 = vunpack.c.l.b16 %v69
    %v181 = vunpack.c.l.b16 %v70
    %v182 = vunpack.c.l.b16 %v71
    %v183 = vunpack.c.l.b16 %v72
    %v184 = vunpack.c.l.b16 %v73
    %v185 = vunpack.c.l.b16 %v74
    %v186 = vpack.c.b16 %v155, %v154
    %v187 = vpack.c.b16 %v157, %v156
    %v188 = vpack.c.b16 %v159, %v158
    %v189 = vpack.c.b16 %v161, %v160
    %v190 = vpack.c.b16 %v163, %v162
    %v191 = vpack.c.b16 %v165, %v164
    %v192 = vpack.c.b16 %v167, %v166
    %v193 = vpack.c.b16 %v169, %v168
    %v194 = vpack.c.b16 %v171, %v170
    %v195 = vpack.c.b16 %v173, %v172
    %v196 = vpack.c.b16 %v175, %v174
    %v197 = vpack.c.b16 %v177, %v176
    %v198 = vpack.c.b16 %v179, %v178
    %v199 = vpack.c.b16 %v181, %v180
    %v200 = vpack.c.b16 %v183, %v182
    %v201 = vpack.c.b16 %v185, %v184
    %218 = vmatprep.subr.bf16.mxu0 0
    %219 = vmatpush1.bf16.msra.mxu0 %v186
    %220 = vmatprep.subr.bf16.mxu0 0
    %221 = vmatpush1.bf16.msra.mxu0 %v187
    %222 = vmatprep.subr.bf16.mxu0 0
    %223 = vmatpush1.bf16.msra.mxu0 %v188
    %224 = vmatprep.subr.bf16.mxu0 0
    %225 = vmatpush1.bf16.msra.mxu0 %v189
    %226 = vmatprep.subr.bf16.mxu0 0
    %227 = vmatpush1.bf16.msra.mxu0 %v190
    %228 = vmatprep.subr.bf16.mxu0 0
    %229 = vmatpush1.bf16.msra.mxu0 %v191
    %230 = vmatprep.subr.bf16.mxu0 0
    %231 = vmatpush1.bf16.msra.mxu0 %v192
    %232 = vmatprep.subr.bf16.mxu0 0
    %233 = vmatpush1.bf16.msra.mxu0 %v193
    %234 = vmatprep.subr.bf16.mxu0 0
    %235 = vmatpush1.bf16.msra.mxu0 %v194
    %236 = vmatprep.subr.bf16.mxu0 0
    %237 = vmatpush1.bf16.msra.mxu0 %v195
    %238 = vmatprep.subr.bf16.mxu0 0
    %239 = vmatpush1.bf16.msra.mxu0 %v196
    %240 = vmatprep.subr.bf16.mxu0 0
    %241 = vmatpush1.bf16.msra.mxu0 %v197
    %242 = vmatprep.subr.bf16.mxu0 0
    %243 = vmatpush1.bf16.msra.mxu0 %v198
    %244 = vmatprep.subr.bf16.mxu0 0
    %245 = vmatpush1.bf16.msra.mxu0 %v199
    %246 = vmatprep.subr.bf16.mxu0 0
    %247 = vmatpush1.bf16.msra.mxu0 %v200
    %248 = vmatprep.subr.bf16.mxu0 0
    %249 = vmatpush1.bf16.msra.mxu0 %v201
    %250 = vmatprep.mubr.bf16.mxu0 %v103
    %251 = vmatmul.mubr.bf16.gmra.mrb[0].mxu0 %v102
    %v252 = vpop.f32.mrb[0].mxu0
    %v253 = vadd.f32 0.0, %v252
    %v254 = vpop.f32.mrb[0].mxu0
    %v255 = vpop.f32.mrb[0].mxu0
    %v256 = vadd.f32 0.0, %v255
    %v257 = vpop.f32.mrb[0].mxu0
    %258 = vmatprep.mubr.bf16.mxu0 %v105
    %259 = vmatmul.mubr.bf16.gmra.mrb[0].mxu0 %v104
    %v260 = vpop.f32.mrb[0].mxu0
    %v261 = vadd.f32 0.0, %v260
    %v262 = vpop.f32.mrb[0].mxu0
    %v263 = vpop.f32.mrb[0].mxu0
    %v264 = vadd.f32 0.0, %v263
    %v265 = vpop.f32.mrb[0].mxu0
    %266 = vmatprep.mubr.bf16.mxu0 %v107
    %267 = vmatmul.mubr.bf16.gmra.mrb[0].mxu0 %v106
    %v268 = vpop.f32.mrb[0].mxu0
    %v269 = vadd.f32 0.0, %v268
    %v270 = vpop.f32.mrb[0].mxu0
    %v271 = vpop.f32.mrb[0].mxu0
    %v272 = vadd.f32 0.0, %v271
    %v273 = vpop.f32.mrb[0].mxu0
    %274 = vmatprep.mubr.bf16.mxu0 %v109
    %275 = vmatmul.mubr.bf16.gmra.mrb[0].mxu0 %v108
    %v276 = vpop.f32.mrb[0].mxu0
    %v277 = vadd.f32 0.0, %v276
    %v278 = vpop.f32.mrb[0].mxu0
    %v279 = vpop.f32.mrb[0].mxu0
    %v280 = vadd.f32 0.0, %v279
    %v281 = vpop.f32.mrb[0].mxu0
    %282 = vmatprep.mubr.bf16.mxu0 %v111
    %283 = vmatmul.mubr.bf16.gmra.mrb[0].mxu0 %v110
    %v284 = vpop.f32.mrb[0].mxu0
    %v285 = vadd.f32 0.0, %v284
    %v286 = vpop.f32.mrb[0].mxu0
    %v287 = vpop.f32.mrb[0].mxu0
    %v288 = vpop.f32.mrb[0].mxu0
    %289 = vdwg.mxu0
    %v290 = vld [vmem:[%s2] sm:$0x1]
    %v291 = vld [vmem:[%s3] sm:$0x1]
    %v292 = vadd.f32 %v253, %v256
    %v293 = vadd.f32 %v292, %v261
    %v294 = vadd.f32 %v293, %v264
    %v295 = vadd.f32 %v294, %v269
    %v296 = vadd.f32 %v295, %v272
    %v297 = vadd.f32 %v296, %v277
    %v298 = vadd.f32 %v297, %v280
    %v299 = vadd.f32 %v298, %v285
    %v300 = vrot.slane %v299, 4
    %v301 = vadd.f32 %v299, %v300
    %v302 = vrot.slane %v301, 2
    %v303 = vadd.f32 %v301, %v302
    %v304 = vrot.slane %v303, 1
    %v305 = vadd.f32 %v303, %v304
    %v306 = vmul.f32 %v305, 0.013888889
    %v307 = vsub.f32 %v253, %v306
    %v308 = vsub.f32 %v256, %v306
    %v309 = vsub.f32 %v261, %v306
    %v310 = vsub.f32 %v264, %v306
    %v311 = vsub.f32 %v269, %v306
    %v312 = vsub.f32 %v272, %v306
    %v313 = vsub.f32 %v277, %v306
    %v314 = vsub.f32 %v280, %v306
    %v315 = vsub.f32 %v285, %v306
    %v316 = vmul.f32 %v307, %v307
    %v317 = vmul.f32 %v308, %v308
    %v318 = vmul.f32 %v309, %v309
    %v319 = vmul.f32 %v310, %v310
    %v320 = vmul.f32 %v311, %v311
    %v321 = vmul.f32 %v312, %v312
    %v322 = vmul.f32 %v313, %v313
    %v323 = vmul.f32 %v314, %v314
    %v324 = vmul.f32 %v315, %v315
    %v325 = vadd.f32 %v316, %v317
    %v326 = vadd.f32 %v325, %v318
    %v327 = vadd.f32 %v326, %v319
    %v328 = vadd.f32 %v327, %v320
    %v329 = vadd.f32 %v328, %v321
    %v330 = vadd.f32 %v329, %v322
    %v331 = vadd.f32 %v330, %v323
    %v332 = vadd.f32 %v331, %v324
    %v333 = vrot.slane %v332, 4
    %v334 = vadd.f32 %v332, %v333
    %v335 = vrot.slane %v334, 2
    %v336 = vadd.f32 %v334, %v335
    %v337 = vrot.slane %v336, 1
    %v338 = vadd.f32 %v336, %v337
    %v339 = vmul.f32 %v338, 0.013888889
    %v340 = vadd.f32 %v339, 1e-05
    %v341 = vrsqrt.pop %v340
    %v342 = vmul.f32 %v307, %v341
    %v343 = vmul.f32 %v308, %v341
    %v344 = vmul.f32 %v309, %v341
    %v345 = vmul.f32 %v310, %v341
    %v346 = vmul.f32 %v311, %v341
    %v347 = vmul.f32 %v312, %v341
    %v348 = vmul.f32 %v313, %v341
    %v349 = vmul.f32 %v314, %v341
    %v350 = vmul.f32 %v315, %v341
    %v352 = vlaneseq
    %v353 = vshrl.u32 %v352, 7
    %v354 = vsub.s32 0, %v353
    %v355 = vrot.slane %v290, %v354
    %v357 = vmul.f32 %v342, %v355
    %v358 = vmul.f32 %v343, %v355
    %v359 = vmul.f32 %v344, %v355
    %v360 = vmul.f32 %v345, %v355
    %v361 = vmul.f32 %v346, %v355
    %v362 = vmul.f32 %v347, %v355
    %v363 = vmul.f32 %v348, %v355
    %v364 = vmul.f32 %v349, %v355
    %v365 = vmul.f32 %v350, %v355
    %v367 = vlaneseq
    %v368 = vshrl.u32 %v367, 7
    %v369 = vsub.s32 0, %v368
    %v370 = vrot.slane %v291, %v369
    %v372 = vadd.f32 %v357, %v370
    %v373 = vadd.f32 %v358, %v370
    %v374 = vadd.f32 %v359, %v370
    %v375 = vadd.f32 %v360, %v370
    %v376 = vadd.f32 %v361, %v370
    %v377 = vadd.f32 %v362, %v370
    %v378 = vadd.f32 %v363, %v370
    %v379 = vadd.f32 %v364, %v370
    %v380 = vadd.f32 %v365, %v370
    %v381 = vpack.c.bf16 %v373, %v372
    %v382 = vpack.c.bf16 %v375, %v374
    %v383 = vpack.c.bf16 %v377, %v376
    %v384 = vpack.c.bf16 %v379, %v378
    %v385 = vpack.c.bf16 %v380, %v380
    %v386 = vld [vmem:[%s4] sm:$0xf]
    %v387 = vld [vmem:[%s4 + $0x4] sm:$0xf]
    %v388 = vld [vmem:[%s4 + $0x8] sm:$0xf]
    %v389 = vld [vmem:[%s4 + $0xc] sm:$0xf]
    %v390 = vld [vmem:[%s4 + $0x10] sm:$0xf]
    %v391 = vld [vmem:[%s4 + $0x14] sm:$0xf]
    %v392 = vld [vmem:[%s4 + $0x18] sm:$0xf]
    %v393 = vld [vmem:[%s4 + $0x1c] sm:$0xf]
    %v394 = vld [vmem:[%s4 + $0x20] sm:$0xf]
    %v404 = vunpack.c.l.b16 %v386
    %v405 = vunpack.c.l.b16 %v387
    %v406 = vunpack.c.l.b16 %v388
    %v407 = vunpack.c.l.b16 %v389
    %v408 = vunpack.c.l.b16 %v390
    %v409 = vunpack.c.l.b16 %v391
    %v410 = vunpack.c.l.b16 %v392
    %v411 = vunpack.c.l.b16 %v393
    %v412 = vunpack.c.l.b16 %v394
    %v413 = vpack.c.b16 %v405, %v404
    %v414 = vpack.c.b16 %v407, %v406
    %v415 = vpack.c.b16 %v409, %v408
    %v416 = vpack.c.b16 %v411, %v410
    %v417 = vpack.c.b16 %v412, %v412
    %vm418 = vcmask 588800
    %v420 = vsel %vm418, %v413, 0
    %v423 = vsel %vm418, %v414, 0
    %v426 = vsel %vm418, %v415, 0
    %v429 = vsel %vm418, %v416, 0
    %v432 = vsel %vm418, %v417, 0
    %vm434 = vcmask 1043456
    %v436 = vsel %vm434, %v385, 0
    %438 = vmatprep.subr.bf16.mxu0 0
    %439 = vmatpush1.bf16.msra.mxu0 %v381
    %440 = vmatprep.subr.bf16.mxu0 0
    %441 = vmatpush1.bf16.msra.mxu0 %v382
    %442 = vmatprep.subr.bf16.mxu0 0
    %443 = vmatpush1.bf16.msra.mxu0 %v383
    %444 = vmatprep.subr.bf16.mxu0 0
    %445 = vmatpush1.bf16.msra.mxu0 %v384
    %446 = vmatprep.subr.bf16.mxu0 0
    %447 = vmatpush1.bf16.msra.mxu0 %v436
    %448 = vmatprep.subr.bf16.mxu0 0
    %449 = vmatpush1.bf16.msra.mxu0 0
    %450 = vmatprep.subr.bf16.mxu0 0
    %451 = vmatpush1.bf16.msra.mxu0 0
    %452 = vmatprep.subr.bf16.mxu0 0
    %453 = vmatpush1.bf16.msra.mxu0 0
    %454 = vmatprep.subr.bf16.mxu0 0
    %455 = vmatpush1.bf16.msra.mxu0 0
    %456 = vmatprep.subr.bf16.mxu0 0
    %457 = vmatpush1.bf16.msra.mxu0 0
    %458 = vmatprep.subr.bf16.mxu0 0
    %459 = vmatpush1.bf16.msra.mxu0 0
    %460 = vmatprep.subr.bf16.mxu0 0
    %461 = vmatpush1.bf16.msra.mxu0 0
    %462 = vmatprep.subr.bf16.mxu0 0
    %463 = vmatpush1.bf16.msra.mxu0 0
    %464 = vmatprep.subr.bf16.mxu0 0
    %465 = vmatpush1.bf16.msra.mxu0 0
    %466 = vmatprep.subr.bf16.mxu0 0
    %467 = vmatpush1.bf16.msra.mxu0 0
    %468 = vmatprep.subr.bf16.mxu0 0
    %469 = vmatpush1.bf16.msra.mxu0 0
    %470 = vmatprep.mubr.bf16.mxu0 0
    %471 = vmatmul.mubr.bf16.gmra.mrb[0].mxu0 %v420
    %v472 = vpop.f32.mrb[0].mxu0
    %v473 = vadd.f32 0.0, %v472
    %v474 = vpop.f32.mrb[0].mxu0
    %v475 = vpop.f32.mrb[0].mxu0
    %v476 = vadd.f32 0.0, %v475
    %v477 = vpop.f32.mrb[0].mxu0
    %478 = vmatprep.mubr.bf16.mxu0 0
    %479 = vmatmul.mubr.bf16.gmra.mrb[0].mxu0 %v423
    %v480 = vpop.f32.mrb[0].mxu0
    %v481 = vadd.f32 0.0, %v480
    %v482 = vpop.f32.mrb[0].mxu0
    %v483 = vpop.f32.mrb[0].mxu0
    %v484 = vadd.f32 0.0, %v483
    %v485 = vpop.f32.mrb[0].mxu0
    %486 = vmatprep.mubr.bf16.mxu0 0
    %487 = vmatmul.mubr.bf16.gmra.mrb[0].mxu0 %v426
    %v488 = vpop.f32.mrb[0].mxu0
    %v489 = vadd.f32 0.0, %v488
    %v490 = vpop.f32.mrb[0].mxu0
    %v491 = vpop.f32.mrb[0].mxu0
    %v492 = vadd.f32 0.0, %v491
    %v493 = vpop.f32.mrb[0].mxu0
    %494 = vmatprep.mubr.bf16.mxu0 0
    %495 = vmatmul.mubr.bf16.gmra.mrb[0].mxu0 %v429
    %v496 = vpop.f32.mrb[0].mxu0
    %v497 = vadd.f32 0.0, %v496
    %v498 = vpop.f32.mrb[0].mxu0
    %v499 = vpop.f32.mrb[0].mxu0
    %v500 = vadd.f32 0.0, %v499
    %v501 = vpop.f32.mrb[0].mxu0
    %502 = vmatprep.mubr.bf16.mxu0 0
    %503 = vmatmul.mubr.bf16.gmra.mrb[0].mxu0 %v432
    %v504 = vpop.f32.mrb[0].mxu0
    %v505 = vadd.f32 0.0, %v504
    %v506 = vpop.f32.mrb[0].mxu0
    %v507 = vpop.f32.mrb[0].mxu0
    %v508 = vpop.f32.mrb[0].mxu0
    %509 = vdwg.mxu0
    %v510 = vpack.c.bf16 %v473, %v473
    %v511 = vld [vmem:[%s5] sm:$0xf]
    %v512 = vld [vmem:[%s5 + $0x4] sm:$0xf]
    %v513 = vld [vmem:[%s5 + $0x8] sm:$0xf]
    %v514 = vld [vmem:[%s5 + $0xc] sm:$0xf]
    %v515 = vld [vmem:[%s5 + $0x10] sm:$0xf]
    %v516 = vld [vmem:[%s5 + $0x14] sm:$0xf]
    %v517 = vld [vmem:[%s5 + $0x18] sm:$0xf]
    %v518 = vld [vmem:[%s5 + $0x1c] sm:$0xf]
    %v519 = vld [vmem:[%s5 + $0x20] sm:$0xf]
    %v520 = vld [vmem:[%s5 + $0x24] sm:$0xf]
    %v521 = vld [vmem:[%s5 + $0x28] sm:$0xf]
    %v522 = vld [vmem:[%s5 + $0x2c] sm:$0xf]
    %v523 = vld [vmem:[%s5 + $0x30] sm:$0xf]
    %v524 = vld [vmem:[%s5 + $0x34] sm:$0xf]
    %v525 = vld [vmem:[%s5 + $0x38] sm:$0xf]
    %v526 = vld [vmem:[%s5 + $0x3c] sm:$0xf]
    %v527 = vpack.c.bf16 %v476, %v476
    %s528 = scalar_lea.vmem %s5, 64
    %v529 = vld [vmem:[%s528] sm:$0xf]
    %v530 = vld [vmem:[%s528 + $0x4] sm:$0xf]
    %v531 = vld [vmem:[%s528 + $0x8] sm:$0xf]
    %v532 = vld [vmem:[%s528 + $0xc] sm:$0xf]
    %v533 = vld [vmem:[%s528 + $0x10] sm:$0xf]
    %v534 = vld [vmem:[%s528 + $0x14] sm:$0xf]
    %v535 = vld [vmem:[%s528 + $0x18] sm:$0xf]
    %v536 = vld [vmem:[%s528 + $0x1c] sm:$0xf]
    %v537 = vld [vmem:[%s528 + $0x20] sm:$0xf]
    %v538 = vld [vmem:[%s528 + $0x24] sm:$0xf]
    %v539 = vld [vmem:[%s528 + $0x28] sm:$0xf]
    %v540 = vld [vmem:[%s528 + $0x2c] sm:$0xf]
    %v541 = vld [vmem:[%s528 + $0x30] sm:$0xf]
    %v542 = vld [vmem:[%s528 + $0x34] sm:$0xf]
    %v543 = vld [vmem:[%s528 + $0x38] sm:$0xf]
    %v544 = vld [vmem:[%s528 + $0x3c] sm:$0xf]
    %v561 = vunpack.c.l.b16 %v529
    %v562 = vunpack.c.l.b16 %v530
    %v563 = vunpack.c.l.b16 %v531
    %v564 = vunpack.c.l.b16 %v532
    %v565 = vunpack.c.l.b16 %v533
    %v566 = vunpack.c.l.b16 %v534
    %v567 = vunpack.c.l.b16 %v535
    %v568 = vunpack.c.l.b16 %v536
    %v569 = vunpack.c.l.b16 %v537
    %v570 = vunpack.c.l.b16 %v538
    %v571 = vunpack.c.l.b16 %v539
    %v572 = vunpack.c.l.b16 %v540
    %v573 = vunpack.c.l.b16 %v541
    %v574 = vunpack.c.l.b16 %v542
    %v575 = vunpack.c.l.b16 %v543
    %v576 = vunpack.c.l.b16 %v544
    %v577 = vpack.c.b16 %v562, %v561
    %v578 = vpack.c.b16 %v564, %v563
    %v579 = vpack.c.b16 %v566, %v565
    %v580 = vpack.c.b16 %v568, %v567
    %v581 = vpack.c.b16 %v570, %v569
    %v582 = vpack.c.b16 %v572, %v571
    %v583 = vpack.c.b16 %v574, %v573
    %v584 = vpack.c.b16 %v576, %v575
    %593 = vmatprep.subr.bf16.mxu0 0
    %594 = vmatpush1.bf16.msra.mxu0 %v577
    %595 = vmatprep.subr.bf16.mxu0 0
    %596 = vmatpush1.bf16.msra.mxu0 %v578
    %597 = vmatprep.subr.bf16.mxu0 0
    %598 = vmatpush1.bf16.msra.mxu0 %v579
    %599 = vmatprep.subr.bf16.mxu0 0
    %600 = vmatpush1.bf16.msra.mxu0 %v580
    %601 = vmatprep.subr.bf16.mxu0 0
    %602 = vmatpush1.bf16.msra.mxu0 %v581
    %603 = vmatprep.subr.bf16.mxu0 0
    %604 = vmatpush1.bf16.msra.mxu0 %v582
    %605 = vmatprep.subr.bf16.mxu0 0
    %606 = vmatpush1.bf16.msra.mxu0 %v583
    %607 = vmatprep.subr.bf16.mxu0 0
    %608 = vmatpush1.bf16.msra.mxu0 %v584
    %609 = vmatprep.subr.bf16.mxu0 0
    %610 = vmatpush1.bf16.msra.mxu0 0
    %611 = vmatprep.subr.bf16.mxu0 0
    %612 = vmatpush1.bf16.msra.mxu0 0
    %613 = vmatprep.subr.bf16.mxu0 0
    %614 = vmatpush1.bf16.msra.mxu0 0
    %615 = vmatprep.subr.bf16.mxu0 0
    %616 = vmatpush1.bf16.msra.mxu0 0
    %617 = vmatprep.subr.bf16.mxu0 0
    %618 = vmatpush1.bf16.msra.mxu0 0
    %619 = vmatprep.subr.bf16.mxu0 0
    %620 = vmatpush1.bf16.msra.mxu0 0
    %621 = vmatprep.subr.bf16.mxu0 0
    %622 = vmatpush1.bf16.msra.mxu0 0
    %623 = vmatprep.subr.bf16.mxu0 0
    %624 = vmatpush1.bf16.msra.mxu0 0
    %625 = vmatprep.mubr.bf16.mxu0 0
    %626 = vmatmul.mubr.bf16.gmra.mrb[0].mxu0 %v527
    %v627 = vpop.f32.mrb[0].mxu0
    %v628 = vadd.f32 0.0, %v627
    %v629 = vpop.f32.mrb[0].mxu0
    %v630 = vpop.f32.mrb[0].mxu0
    %v631 = vpop.f32.mrb[0].mxu0
    %632 = vdwg.mxu0
    %v649 = vunpack.c.l.b16 %v511
    %v650 = vunpack.c.l.b16 %v512
    %v651 = vunpack.c.l.b16 %v513
    %v652 = vunpack.c.l.b16 %v514
    %v653 = vunpack.c.l.b16 %v515
    %v654 = vunpack.c.l.b16 %v516
    %v655 = vunpack.c.l.b16 %v517
    %v656 = vunpack.c.l.b16 %v518
    %v657 = vunpack.c.l.b16 %v519
    %v658 = vunpack.c.l.b16 %v520
    %v659 = vunpack.c.l.b16 %v521
    %v660 = vunpack.c.l.b16 %v522
    %v661 = vunpack.c.l.b16 %v523
    %v662 = vunpack.c.l.b16 %v524
    %v663 = vunpack.c.l.b16 %v525
    %v664 = vunpack.c.l.b16 %v526
    %v665 = vpack.c.b16 %v650, %v649
    %v666 = vpack.c.b16 %v652, %v651
    %v667 = vpack.c.b16 %v654, %v653
    %v668 = vpack.c.b16 %v656, %v655
    %v669 = vpack.c.b16 %v658, %v657
    %v670 = vpack.c.b16 %v660, %v659
    %v671 = vpack.c.b16 %v662, %v661
    %v672 = vpack.c.b16 %v664, %v663
    %681 = vmatprep.subr.bf16.mxu0 0
    %682 = vmatpush1.bf16.msra.mxu0 %v665
    %683 = vmatprep.subr.bf16.mxu0 0
    %684 = vmatpush1.bf16.msra.mxu0 %v666
    %685 = vmatprep.subr.bf16.mxu0 0
    %686 = vmatpush1.bf16.msra.mxu0 %v667
    %687 = vmatprep.subr.bf16.mxu0 0
    %688 = vmatpush1.bf16.msra.mxu0 %v668
    %689 = vmatprep.subr.bf16.mxu0 0
    %690 = vmatpush1.bf16.msra.mxu0 %v669
    %691 = vmatprep.subr.bf16.mxu0 0
    %692 = vmatpush1.bf16.msra.mxu0 %v670
    %693 = vmatprep.subr.bf16.mxu0 0
    %694 = vmatpush1.bf16.msra.mxu0 %v671
    %695 = vmatprep.subr.bf16.mxu0 0
    %696 = vmatpush1.bf16.msra.mxu0 %v672
    %697 = vmatprep.subr.bf16.mxu0 0
    %698 = vmatpush1.bf16.msra.mxu0 0
    %699 = vmatprep.subr.bf16.mxu0 0
    %700 = vmatpush1.bf16.msra.mxu0 0
    %701 = vmatprep.subr.bf16.mxu0 0
    %702 = vmatpush1.bf16.msra.mxu0 0
    %703 = vmatprep.subr.bf16.mxu0 0
    %704 = vmatpush1.bf16.msra.mxu0 0
    %705 = vmatprep.subr.bf16.mxu0 0
    %706 = vmatpush1.bf16.msra.mxu0 0
    %707 = vmatprep.subr.bf16.mxu0 0
    %708 = vmatpush1.bf16.msra.mxu0 0
    %709 = vmatprep.subr.bf16.mxu0 0
    %710 = vmatpush1.bf16.msra.mxu0 0
    %711 = vmatprep.subr.bf16.mxu0 0
    %712 = vmatpush1.bf16.msra.mxu0 0
    %713 = vmatprep.mubr.bf16.mxu0 0
    %714 = vmatmul.mubr.bf16.gmra.mrb[0].mxu0 %v510
    %v715 = vpop.f32.mrb[0].mxu0
    %v716 = vadd.f32 %v628, %v715
    %v717 = vpop.f32.mrb[0].mxu0
    %v718 = vpop.f32.mrb[0].mxu0
    %v719 = vpop.f32.mrb[0].mxu0
    %720 = vdwg.mxu0
    %v721 = vpack.c.bf16 %v481, %v481
    %s722 = scalar_lea.vmem %s5, 128
    %v723 = vld [vmem:[%s722] sm:$0xf]
    %v724 = vld [vmem:[%s722 + $0x4] sm:$0xf]
    %v725 = vld [vmem:[%s722 + $0x8] sm:$0xf]
    %v726 = vld [vmem:[%s722 + $0xc] sm:$0xf]
    %v727 = vld [vmem:[%s722 + $0x10] sm:$0xf]
    %v728 = vld [vmem:[%s722 + $0x14] sm:$0xf]
    %v729 = vld [vmem:[%s722 + $0x18] sm:$0xf]
    %v730 = vld [vmem:[%s722 + $0x1c] sm:$0xf]
    %v731 = vld [vmem:[%s722 + $0x20] sm:$0xf]
    %v732 = vld [vmem:[%s722 + $0x24] sm:$0xf]
    %v733 = vld [vmem:[%s722 + $0x28] sm:$0xf]
    %v734 = vld [vmem:[%s722 + $0x2c] sm:$0xf]
    %v735 = vld [vmem:[%s722 + $0x30] sm:$0xf]
    %v736 = vld [vmem:[%s722 + $0x34] sm:$0xf]
    %v737 = vld [vmem:[%s722 + $0x38] sm:$0xf]
    %v738 = vld [vmem:[%s722 + $0x3c] sm:$0xf]
    %v755 = vunpack.c.l.b16 %v723
    %v756 = vunpack.c.l.b16 %v724
    %v757 = vunpack.c.l.b16 %v725
    %v758 = vunpack.c.l.b16 %v726
    %v759 = vunpack.c.l.b16 %v727
    %v760 = vunpack.c.l.b16 %v728
    %v761 = vunpack.c.l.b16 %v729
    %v762 = vunpack.c.l.b16 %v730
    %v763 = vunpack.c.l.b16 %v731
    %v764 = vunpack.c.l.b16 %v732
    %v765 = vunpack.c.l.b16 %v733
    %v766 = vunpack.c.l.b16 %v734
    %v767 = vunpack.c.l.b16 %v735
    %v768 = vunpack.c.l.b16 %v736
    %v769 = vunpack.c.l.b16 %v737
    %v770 = vunpack.c.l.b16 %v738
    %v771 = vpack.c.b16 %v756, %v755
    %v772 = vpack.c.b16 %v758, %v757
    %v773 = vpack.c.b16 %v760, %v759
    %v774 = vpack.c.b16 %v762, %v761
    %v775 = vpack.c.b16 %v764, %v763
    %v776 = vpack.c.b16 %v766, %v765
    %v777 = vpack.c.b16 %v768, %v767
    %v778 = vpack.c.b16 %v770, %v769
    %787 = vmatprep.subr.bf16.mxu0 0
    %788 = vmatpush1.bf16.msra.mxu0 %v771
    %789 = vmatprep.subr.bf16.mxu0 0
    %790 = vmatpush1.bf16.msra.mxu0 %v772
    %791 = vmatprep.subr.bf16.mxu0 0
    %792 = vmatpush1.bf16.msra.mxu0 %v773
    %793 = vmatprep.subr.bf16.mxu0 0
    %794 = vmatpush1.bf16.msra.mxu0 %v774
    %795 = vmatprep.subr.bf16.mxu0 0
    %796 = vmatpush1.bf16.msra.mxu0 %v775
    %797 = vmatprep.subr.bf16.mxu0 0
    %798 = vmatpush1.bf16.msra.mxu0 %v776
    %799 = vmatprep.subr.bf16.mxu0 0
    %800 = vmatpush1.bf16.msra.mxu0 %v777
    %801 = vmatprep.subr.bf16.mxu0 0
    %802 = vmatpush1.bf16.msra.mxu0 %v778
    %803 = vmatprep.subr.bf16.mxu0 0
    %804 = vmatpush1.bf16.msra.mxu0 0
    %805 = vmatprep.subr.bf16.mxu0 0
    %806 = vmatpush1.bf16.msra.mxu0 0
    %807 = vmatprep.subr.bf16.mxu0 0
    %808 = vmatpush1.bf16.msra.mxu0 0
    %809 = vmatprep.subr.bf16.mxu0 0
    %810 = vmatpush1.bf16.msra.mxu0 0
    %811 = vmatprep.subr.bf16.mxu0 0
    %812 = vmatpush1.bf16.msra.mxu0 0
    %813 = vmatprep.subr.bf16.mxu0 0
    %814 = vmatpush1.bf16.msra.mxu0 0
    %815 = vmatprep.subr.bf16.mxu0 0
    %816 = vmatpush1.bf16.msra.mxu0 0
    %817 = vmatprep.subr.bf16.mxu0 0
    %818 = vmatpush1.bf16.msra.mxu0 0
    %819 = vmatprep.mubr.bf16.mxu0 0
    %820 = vmatmul.mubr.bf16.gmra.mrb[0].mxu0 %v721
    %v821 = vpop.f32.mrb[0].mxu0
    %v822 = vadd.f32 0.0, %v821
    %v823 = vpop.f32.mrb[0].mxu0
    %v824 = vpop.f32.mrb[0].mxu0
    %v825 = vpop.f32.mrb[0].mxu0
    %826 = vdwg.mxu0
    %v827 = vadd.f32 %v716, %v822
    %v828 = vpack.c.bf16 %v484, %v484
    %s829 = scalar_lea.vmem %s5, 192
    %v830 = vld [vmem:[%s829] sm:$0xf]
    %v831 = vld [vmem:[%s829 + $0x4] sm:$0xf]
    %v832 = vld [vmem:[%s829 + $0x8] sm:$0xf]
    %v833 = vld [vmem:[%s829 + $0xc] sm:$0xf]
    %v834 = vld [vmem:[%s829 + $0x10] sm:$0xf]
    %v835 = vld [vmem:[%s829 + $0x14] sm:$0xf]
    %v836 = vld [vmem:[%s829 + $0x18] sm:$0xf]
    %v837 = vld [vmem:[%s829 + $0x1c] sm:$0xf]
    %v838 = vld [vmem:[%s829 + $0x20] sm:$0xf]
    %v839 = vld [vmem:[%s829 + $0x24] sm:$0xf]
    %v840 = vld [vmem:[%s829 + $0x28] sm:$0xf]
    %v841 = vld [vmem:[%s829 + $0x2c] sm:$0xf]
    %v842 = vld [vmem:[%s829 + $0x30] sm:$0xf]
    %v843 = vld [vmem:[%s829 + $0x34] sm:$0xf]
    %v844 = vld [vmem:[%s829 + $0x38] sm:$0xf]
    %v845 = vld [vmem:[%s829 + $0x3c] sm:$0xf]
    %v862 = vunpack.c.l.b16 %v830
    %v863 = vunpack.c.l.b16 %v831
    %v864 = vunpack.c.l.b16 %v832
    %v865 = vunpack.c.l.b16 %v833
    %v866 = vunpack.c.l.b16 %v834
    %v867 = vunpack.c.l.b16 %v835
    %v868 = vunpack.c.l.b16 %v836
    %v869 = vunpack.c.l.b16 %v837
    %v870 = vunpack.c.l.b16 %v838
    %v871 = vunpack.c.l.b16 %v839
    %v872 = vunpack.c.l.b16 %v840
    %v873 = vunpack.c.l.b16 %v841
    %v874 = vunpack.c.l.b16 %v842
    %v875 = vunpack.c.l.b16 %v843
    %v876 = vunpack.c.l.b16 %v844
    %v877 = vunpack.c.l.b16 %v845
    %v878 = vpack.c.b16 %v863, %v862
    %v879 = vpack.c.b16 %v865, %v864
    %v880 = vpack.c.b16 %v867, %v866
    %v881 = vpack.c.b16 %v869, %v868
    %v882 = vpack.c.b16 %v871, %v870
    %v883 = vpack.c.b16 %v873, %v872
    %v884 = vpack.c.b16 %v875, %v874
    %v885 = vpack.c.b16 %v877, %v876
    %894 = vmatprep.subr.bf16.mxu0 0
    %895 = vmatpush1.bf16.msra.mxu0 %v878
    %896 = vmatprep.subr.bf16.mxu0 0
    %897 = vmatpush1.bf16.msra.mxu0 %v879
    %898 = vmatprep.subr.bf16.mxu0 0
    %899 = vmatpush1.bf16.msra.mxu0 %v880
    %900 = vmatprep.subr.bf16.mxu0 0
    %901 = vmatpush1.bf16.msra.mxu0 %v881
    %902 = vmatprep.subr.bf16.mxu0 0
    %903 = vmatpush1.bf16.msra.mxu0 %v882
    %904 = vmatprep.subr.bf16.mxu0 0
    %905 = vmatpush1.bf16.msra.mxu0 %v883
    %906 = vmatprep.subr.bf16.mxu0 0
    %907 = vmatpush1.bf16.msra.mxu0 %v884
    %908 = vmatprep.subr.bf16.mxu0 0
    %909 = vmatpush1.bf16.msra.mxu0 %v885
    %910 = vmatprep.subr.bf16.mxu0 0
    %911 = vmatpush1.bf16.msra.mxu0 0
    %912 = vmatprep.subr.bf16.mxu0 0
    %913 = vmatpush1.bf16.msra.mxu0 0
    %914 = vmatprep.subr.bf16.mxu0 0
    %915 = vmatpush1.bf16.msra.mxu0 0
    %916 = vmatprep.subr.bf16.mxu0 0
    %917 = vmatpush1.bf16.msra.mxu0 0
    %918 = vmatprep.subr.bf16.mxu0 0
    %919 = vmatpush1.bf16.msra.mxu0 0
    %920 = vmatprep.subr.bf16.mxu0 0
    %921 = vmatpush1.bf16.msra.mxu0 0
    %922 = vmatprep.subr.bf16.mxu0 0
    %923 = vmatpush1.bf16.msra.mxu0 0
    %924 = vmatprep.subr.bf16.mxu0 0
    %925 = vmatpush1.bf16.msra.mxu0 0
    %926 = vmatprep.mubr.bf16.mxu0 0
    %927 = vmatmul.mubr.bf16.gmra.mrb[0].mxu0 %v828
    %v928 = vpop.f32.mrb[0].mxu0
    %v929 = vadd.f32 0.0, %v928
    %v930 = vpop.f32.mrb[0].mxu0
    %v931 = vpop.f32.mrb[0].mxu0
    %v932 = vpop.f32.mrb[0].mxu0
    %933 = vdwg.mxu0
    %v934 = vadd.f32 %v827, %v929
    %v935 = vpack.c.bf16 %v489, %v489
    %s936 = scalar_lea.vmem %s5, 256
    %v937 = vld [vmem:[%s936] sm:$0xf]
    %v938 = vld [vmem:[%s936 + $0x4] sm:$0xf]
    %v939 = vld [vmem:[%s936 + $0x8] sm:$0xf]
    %v940 = vld [vmem:[%s936 + $0xc] sm:$0xf]
    %v941 = vld [vmem:[%s936 + $0x10] sm:$0xf]
    %v942 = vld [vmem:[%s936 + $0x14] sm:$0xf]
    %v943 = vld [vmem:[%s936 + $0x18] sm:$0xf]
    %v944 = vld [vmem:[%s936 + $0x1c] sm:$0xf]
    %v945 = vld [vmem:[%s936 + $0x20] sm:$0xf]
    %v946 = vld [vmem:[%s936 + $0x24] sm:$0xf]
    %v947 = vld [vmem:[%s936 + $0x28] sm:$0xf]
    %v948 = vld [vmem:[%s936 + $0x2c] sm:$0xf]
    %v949 = vld [vmem:[%s936 + $0x30] sm:$0xf]
    %v950 = vld [vmem:[%s936 + $0x34] sm:$0xf]
    %v951 = vld [vmem:[%s936 + $0x38] sm:$0xf]
    %v952 = vld [vmem:[%s936 + $0x3c] sm:$0xf]
    %v969 = vunpack.c.l.b16 %v937
    %v970 = vunpack.c.l.b16 %v938
    %v971 = vunpack.c.l.b16 %v939
    %v972 = vunpack.c.l.b16 %v940
    %v973 = vunpack.c.l.b16 %v941
    %v974 = vunpack.c.l.b16 %v942
    %v975 = vunpack.c.l.b16 %v943
    %v976 = vunpack.c.l.b16 %v944
    %v977 = vunpack.c.l.b16 %v945
    %v978 = vunpack.c.l.b16 %v946
    %v979 = vunpack.c.l.b16 %v947
    %v980 = vunpack.c.l.b16 %v948
    %v981 = vunpack.c.l.b16 %v949
    %v982 = vunpack.c.l.b16 %v950
    %v983 = vunpack.c.l.b16 %v951
    %v984 = vunpack.c.l.b16 %v952
    %v985 = vpack.c.b16 %v970, %v969
    %v986 = vpack.c.b16 %v972, %v971
    %v987 = vpack.c.b16 %v974, %v973
    %v988 = vpack.c.b16 %v976, %v975
    %v989 = vpack.c.b16 %v978, %v977
    %v990 = vpack.c.b16 %v980, %v979
    %v991 = vpack.c.b16 %v982, %v981
    %v992 = vpack.c.b16 %v984, %v983
    %1001 = vmatprep.subr.bf16.mxu0 0
    %1002 = vmatpush1.bf16.msra.mxu0 %v985
    %1003 = vmatprep.subr.bf16.mxu0 0
    %1004 = vmatpush1.bf16.msra.mxu0 %v986
    %1005 = vmatprep.subr.bf16.mxu0 0
    %1006 = vmatpush1.bf16.msra.mxu0 %v987
    %1007 = vmatprep.subr.bf16.mxu0 0
    %1008 = vmatpush1.bf16.msra.mxu0 %v988
    %1009 = vmatprep.subr.bf16.mxu0 0
    %1010 = vmatpush1.bf16.msra.mxu0 %v989
    %1011 = vmatprep.subr.bf16.mxu0 0
    %1012 = vmatpush1.bf16.msra.mxu0 %v990
    %1013 = vmatprep.subr.bf16.mxu0 0
    %1014 = vmatpush1.bf16.msra.mxu0 %v991
    %1015 = vmatprep.subr.bf16.mxu0 0
    %1016 = vmatpush1.bf16.msra.mxu0 %v992
    %1017 = vmatprep.subr.bf16.mxu0 0
    %1018 = vmatpush1.bf16.msra.mxu0 0
    %1019 = vmatprep.subr.bf16.mxu0 0
    %1020 = vmatpush1.bf16.msra.mxu0 0
    %1021 = vmatprep.subr.bf16.mxu0 0
    %1022 = vmatpush1.bf16.msra.mxu0 0
    %1023 = vmatprep.subr.bf16.mxu0 0
    %1024 = vmatpush1.bf16.msra.mxu0 0
    %1025 = vmatprep.subr.bf16.mxu0 0
    %1026 = vmatpush1.bf16.msra.mxu0 0
    %1027 = vmatprep.subr.bf16.mxu0 0
    %1028 = vmatpush1.bf16.msra.mxu0 0
    %1029 = vmatprep.subr.bf16.mxu0 0
    %1030 = vmatpush1.bf16.msra.mxu0 0
    %1031 = vmatprep.subr.bf16.mxu0 0
    %1032 = vmatpush1.bf16.msra.mxu0 0
    %1033 = vmatprep.mubr.bf16.mxu0 0
    %1034 = vmatmul.mubr.bf16.gmra.mrb[0].mxu0 %v935
    %v1035 = vpop.f32.mrb[0].mxu0
    %v1036 = vadd.f32 0.0, %v1035
    %v1037 = vpop.f32.mrb[0].mxu0
    %v1038 = vpop.f32.mrb[0].mxu0
    %v1039 = vpop.f32.mrb[0].mxu0
    %1040 = vdwg.mxu0
    %v1041 = vadd.f32 %v934, %v1036
    %v1042 = vpack.c.bf16 %v492, %v492
    %s1043 = scalar_lea.vmem %s5, 320
    %v1044 = vld [vmem:[%s1043] sm:$0xf]
    %v1045 = vld [vmem:[%s1043 + $0x4] sm:$0xf]
    %v1046 = vld [vmem:[%s1043 + $0x8] sm:$0xf]
    %v1047 = vld [vmem:[%s1043 + $0xc] sm:$0xf]
    %v1048 = vld [vmem:[%s1043 + $0x10] sm:$0xf]
    %v1049 = vld [vmem:[%s1043 + $0x14] sm:$0xf]
    %v1050 = vld [vmem:[%s1043 + $0x18] sm:$0xf]
    %v1051 = vld [vmem:[%s1043 + $0x1c] sm:$0xf]
    %v1052 = vld [vmem:[%s1043 + $0x20] sm:$0xf]
    %v1053 = vld [vmem:[%s1043 + $0x24] sm:$0xf]
    %v1054 = vld [vmem:[%s1043 + $0x28] sm:$0xf]
    %v1055 = vld [vmem:[%s1043 + $0x2c] sm:$0xf]
    %v1056 = vld [vmem:[%s1043 + $0x30] sm:$0xf]
    %v1057 = vld [vmem:[%s1043 + $0x34] sm:$0xf]
    %v1058 = vld [vmem:[%s1043 + $0x38] sm:$0xf]
    %v1059 = vld [vmem:[%s1043 + $0x3c] sm:$0xf]
    %v1076 = vunpack.c.l.b16 %v1044
    %v1077 = vunpack.c.l.b16 %v1045
    %v1078 = vunpack.c.l.b16 %v1046
    %v1079 = vunpack.c.l.b16 %v1047
    %v1080 = vunpack.c.l.b16 %v1048
    %v1081 = vunpack.c.l.b16 %v1049
    %v1082 = vunpack.c.l.b16 %v1050
    %v1083 = vunpack.c.l.b16 %v1051
    %v1084 = vunpack.c.l.b16 %v1052
    %v1085 = vunpack.c.l.b16 %v1053
    %v1086 = vunpack.c.l.b16 %v1054
    %v1087 = vunpack.c.l.b16 %v1055
    %v1088 = vunpack.c.l.b16 %v1056
    %v1089 = vunpack.c.l.b16 %v1057
    %v1090 = vunpack.c.l.b16 %v1058
    %v1091 = vunpack.c.l.b16 %v1059
    %v1092 = vpack.c.b16 %v1077, %v1076
    %v1093 = vpack.c.b16 %v1079, %v1078
    %v1094 = vpack.c.b16 %v1081, %v1080
    %v1095 = vpack.c.b16 %v1083, %v1082
    %v1096 = vpack.c.b16 %v1085, %v1084
    %v1097 = vpack.c.b16 %v1087, %v1086
    %v1098 = vpack.c.b16 %v1089, %v1088
    %v1099 = vpack.c.b16 %v1091, %v1090
    %1108 = vmatprep.subr.bf16.mxu0 0
    %1109 = vmatpush1.bf16.msra.mxu0 %v1092
    %1110 = vmatprep.subr.bf16.mxu0 0
    %1111 = vmatpush1.bf16.msra.mxu0 %v1093
    %1112 = vmatprep.subr.bf16.mxu0 0
    %1113 = vmatpush1.bf16.msra.mxu0 %v1094
    %1114 = vmatprep.subr.bf16.mxu0 0
    %1115 = vmatpush1.bf16.msra.mxu0 %v1095
    %1116 = vmatprep.subr.bf16.mxu0 0
    %1117 = vmatpush1.bf16.msra.mxu0 %v1096
    %1118 = vmatprep.subr.bf16.mxu0 0
    %1119 = vmatpush1.bf16.msra.mxu0 %v1097
    %1120 = vmatprep.subr.bf16.mxu0 0
    %1121 = vmatpush1.bf16.msra.mxu0 %v1098
    %1122 = vmatprep.subr.bf16.mxu0 0
    %1123 = vmatpush1.bf16.msra.mxu0 %v1099
    %1124 = vmatprep.subr.bf16.mxu0 0
    %1125 = vmatpush1.bf16.msra.mxu0 0
    %1126 = vmatprep.subr.bf16.mxu0 0
    %1127 = vmatpush1.bf16.msra.mxu0 0
    %1128 = vmatprep.subr.bf16.mxu0 0
    %1129 = vmatpush1.bf16.msra.mxu0 0
    %1130 = vmatprep.subr.bf16.mxu0 0
    %1131 = vmatpush1.bf16.msra.mxu0 0
    %1132 = vmatprep.subr.bf16.mxu0 0
    %1133 = vmatpush1.bf16.msra.mxu0 0
    %1134 = vmatprep.subr.bf16.mxu0 0
    %1135 = vmatpush1.bf16.msra.mxu0 0
    %1136 = vmatprep.subr.bf16.mxu0 0
    %1137 = vmatpush1.bf16.msra.mxu0 0
    %1138 = vmatprep.subr.bf16.mxu0 0
    %1139 = vmatpush1.bf16.msra.mxu0 0
    %1140 = vmatprep.mubr.bf16.mxu0 0
    %1141 = vmatmul.mubr.bf16.gmra.mrb[0].mxu0 %v1042
    %v1142 = vpop.f32.mrb[0].mxu0
    %v1143 = vadd.f32 0.0, %v1142
    %v1144 = vpop.f32.mrb[0].mxu0
    %v1145 = vpop.f32.mrb[0].mxu0
    %v1146 = vpop.f32.mrb[0].mxu0
    %1147 = vdwg.mxu0
    %v1148 = vadd.f32 %v1041, %v1143
    %v1149 = vpack.c.bf16 %v497, %v497
    %s1150 = scalar_lea.vmem %s5, 384
    %v1151 = vld [vmem:[%s1150] sm:$0xf]
    %v1152 = vld [vmem:[%s1150 + $0x4] sm:$0xf]
    %v1153 = vld [vmem:[%s1150 + $0x8] sm:$0xf]
    %v1154 = vld [vmem:[%s1150 + $0xc] sm:$0xf]
    %v1155 = vld [vmem:[%s1150 + $0x10] sm:$0xf]
    %v1156 = vld [vmem:[%s1150 + $0x14] sm:$0xf]
    %v1157 = vld [vmem:[%s1150 + $0x18] sm:$0xf]
    %v1158 = vld [vmem:[%s1150 + $0x1c] sm:$0xf]
    %v1159 = vld [vmem:[%s1150 + $0x20] sm:$0xf]
    %v1160 = vld [vmem:[%s1150 + $0x24] sm:$0xf]
    %v1161 = vld [vmem:[%s1150 + $0x28] sm:$0xf]
    %v1162 = vld [vmem:[%s1150 + $0x2c] sm:$0xf]
    %v1163 = vld [vmem:[%s1150 + $0x30] sm:$0xf]
    %v1164 = vld [vmem:[%s1150 + $0x34] sm:$0xf]
    %v1165 = vld [vmem:[%s1150 + $0x38] sm:$0xf]
    %v1166 = vld [vmem:[%s1150 + $0x3c] sm:$0xf]
    %v1183 = vunpack.c.l.b16 %v1151
    %v1184 = vunpack.c.l.b16 %v1152
    %v1185 = vunpack.c.l.b16 %v1153
    %v1186 = vunpack.c.l.b16 %v1154
    %v1187 = vunpack.c.l.b16 %v1155
    %v1188 = vunpack.c.l.b16 %v1156
    %v1189 = vunpack.c.l.b16 %v1157
    %v1190 = vunpack.c.l.b16 %v1158
    %v1191 = vunpack.c.l.b16 %v1159
    %v1192 = vunpack.c.l.b16 %v1160
    %v1193 = vunpack.c.l.b16 %v1161
    %v1194 = vunpack.c.l.b16 %v1162
    %v1195 = vunpack.c.l.b16 %v1163
    %v1196 = vunpack.c.l.b16 %v1164
    %v1197 = vunpack.c.l.b16 %v1165
    %v1198 = vunpack.c.l.b16 %v1166
    %v1199 = vpack.c.b16 %v1184, %v1183
    %v1200 = vpack.c.b16 %v1186, %v1185
    %v1201 = vpack.c.b16 %v1188, %v1187
    %v1202 = vpack.c.b16 %v1190, %v1189
    %v1203 = vpack.c.b16 %v1192, %v1191
    %v1204 = vpack.c.b16 %v1194, %v1193
    %v1205 = vpack.c.b16 %v1196, %v1195
    %v1206 = vpack.c.b16 %v1198, %v1197
    %1215 = vmatprep.subr.bf16.mxu0 0
    %1216 = vmatpush1.bf16.msra.mxu0 %v1199
    %1217 = vmatprep.subr.bf16.mxu0 0
    %1218 = vmatpush1.bf16.msra.mxu0 %v1200
    %1219 = vmatprep.subr.bf16.mxu0 0
    %1220 = vmatpush1.bf16.msra.mxu0 %v1201
    %1221 = vmatprep.subr.bf16.mxu0 0
    %1222 = vmatpush1.bf16.msra.mxu0 %v1202
    %1223 = vmatprep.subr.bf16.mxu0 0
    %1224 = vmatpush1.bf16.msra.mxu0 %v1203
    %1225 = vmatprep.subr.bf16.mxu0 0
    %1226 = vmatpush1.bf16.msra.mxu0 %v1204
    %1227 = vmatprep.subr.bf16.mxu0 0
    %1228 = vmatpush1.bf16.msra.mxu0 %v1205
    %1229 = vmatprep.subr.bf16.mxu0 0
    %1230 = vmatpush1.bf16.msra.mxu0 %v1206
    %1231 = vmatprep.subr.bf16.mxu0 0
    %1232 = vmatpush1.bf16.msra.mxu0 0
    %1233 = vmatprep.subr.bf16.mxu0 0
    %1234 = vmatpush1.bf16.msra.mxu0 0
    %1235 = vmatprep.subr.bf16.mxu0 0
    %1236 = vmatpush1.bf16.msra.mxu0 0
    %1237 = vmatprep.subr.bf16.mxu0 0
    %1238 = vmatpush1.bf16.msra.mxu0 0
    %1239 = vmatprep.subr.bf16.mxu0 0
    %1240 = vmatpush1.bf16.msra.mxu0 0
    %1241 = vmatprep.subr.bf16.mxu0 0
    %1242 = vmatpush1.bf16.msra.mxu0 0
    %1243 = vmatprep.subr.bf16.mxu0 0
    %1244 = vmatpush1.bf16.msra.mxu0 0
    %1245 = vmatprep.subr.bf16.mxu0 0
    %1246 = vmatpush1.bf16.msra.mxu0 0
    %1247 = vmatprep.mubr.bf16.mxu0 0
    %1248 = vmatmul.mubr.bf16.gmra.mrb[0].mxu0 %v1149
    %v1249 = vpop.f32.mrb[0].mxu0
    %v1250 = vadd.f32 0.0, %v1249
    %v1251 = vpop.f32.mrb[0].mxu0
    %v1252 = vpop.f32.mrb[0].mxu0
    %v1253 = vpop.f32.mrb[0].mxu0
    %1254 = vdwg.mxu0
    %v1255 = vadd.f32 %v1148, %v1250
    %v1256 = vpack.c.bf16 %v500, %v500
    %s1257 = scalar_lea.vmem %s5, 448
    %v1258 = vld [vmem:[%s1257] sm:$0xf]
    %v1259 = vld [vmem:[%s1257 + $0x4] sm:$0xf]
    %v1260 = vld [vmem:[%s1257 + $0x8] sm:$0xf]
    %v1261 = vld [vmem:[%s1257 + $0xc] sm:$0xf]
    %v1262 = vld [vmem:[%s1257 + $0x10] sm:$0xf]
    %v1263 = vld [vmem:[%s1257 + $0x14] sm:$0xf]
    %v1264 = vld [vmem:[%s1257 + $0x18] sm:$0xf]
    %v1265 = vld [vmem:[%s1257 + $0x1c] sm:$0xf]
    %v1266 = vld [vmem:[%s1257 + $0x20] sm:$0xf]
    %v1267 = vld [vmem:[%s1257 + $0x24] sm:$0xf]
    %v1268 = vld [vmem:[%s1257 + $0x28] sm:$0xf]
    %v1269 = vld [vmem:[%s1257 + $0x2c] sm:$0xf]
    %v1270 = vld [vmem:[%s1257 + $0x30] sm:$0xf]
    %v1271 = vld [vmem:[%s1257 + $0x34] sm:$0xf]
    %v1272 = vld [vmem:[%s1257 + $0x38] sm:$0xf]
    %v1273 = vld [vmem:[%s1257 + $0x3c] sm:$0xf]
    %v1290 = vunpack.c.l.b16 %v1258
    %v1291 = vunpack.c.l.b16 %v1259
    %v1292 = vunpack.c.l.b16 %v1260
    %v1293 = vunpack.c.l.b16 %v1261
    %v1294 = vunpack.c.l.b16 %v1262
    %v1295 = vunpack.c.l.b16 %v1263
    %v1296 = vunpack.c.l.b16 %v1264
    %v1297 = vunpack.c.l.b16 %v1265
    %v1298 = vunpack.c.l.b16 %v1266
    %v1299 = vunpack.c.l.b16 %v1267
    %v1300 = vunpack.c.l.b16 %v1268
    %v1301 = vunpack.c.l.b16 %v1269
    %v1302 = vunpack.c.l.b16 %v1270
    %v1303 = vunpack.c.l.b16 %v1271
    %v1304 = vunpack.c.l.b16 %v1272
    %v1305 = vunpack.c.l.b16 %v1273
    %v1306 = vpack.c.b16 %v1291, %v1290
    %v1307 = vpack.c.b16 %v1293, %v1292
    %v1308 = vpack.c.b16 %v1295, %v1294
    %v1309 = vpack.c.b16 %v1297, %v1296
    %v1310 = vpack.c.b16 %v1299, %v1298
    %v1311 = vpack.c.b16 %v1301, %v1300
    %v1312 = vpack.c.b16 %v1303, %v1302
    %v1313 = vpack.c.b16 %v1305, %v1304
    %1322 = vmatprep.subr.bf16.mxu0 0
    %1323 = vmatpush1.bf16.msra.mxu0 %v1306
    %1324 = vmatprep.subr.bf16.mxu0 0
    %1325 = vmatpush1.bf16.msra.mxu0 %v1307
    %1326 = vmatprep.subr.bf16.mxu0 0
    %1327 = vmatpush1.bf16.msra.mxu0 %v1308
    %1328 = vmatprep.subr.bf16.mxu0 0
    %1329 = vmatpush1.bf16.msra.mxu0 %v1309
    %1330 = vmatprep.subr.bf16.mxu0 0
    %1331 = vmatpush1.bf16.msra.mxu0 %v1310
    %1332 = vmatprep.subr.bf16.mxu0 0
    %1333 = vmatpush1.bf16.msra.mxu0 %v1311
    %1334 = vmatprep.subr.bf16.mxu0 0
    %1335 = vmatpush1.bf16.msra.mxu0 %v1312
    %1336 = vmatprep.subr.bf16.mxu0 0
    %1337 = vmatpush1.bf16.msra.mxu0 %v1313
    %1338 = vmatprep.subr.bf16.mxu0 0
    %1339 = vmatpush1.bf16.msra.mxu0 0
    %1340 = vmatprep.subr.bf16.mxu0 0
    %1341 = vmatpush1.bf16.msra.mxu0 0
    %1342 = vmatprep.subr.bf16.mxu0 0
    %1343 = vmatpush1.bf16.msra.mxu0 0
    %1344 = vmatprep.subr.bf16.mxu0 0
    %1345 = vmatpush1.bf16.msra.mxu0 0
    %1346 = vmatprep.subr.bf16.mxu0 0
    %1347 = vmatpush1.bf16.msra.mxu0 0
    %1348 = vmatprep.subr.bf16.mxu0 0
    %1349 = vmatpush1.bf16.msra.mxu0 0
    %1350 = vmatprep.subr.bf16.mxu0 0
    %1351 = vmatpush1.bf16.msra.mxu0 0
    %1352 = vmatprep.subr.bf16.mxu0 0
    %1353 = vmatpush1.bf16.msra.mxu0 0
    %1354 = vmatprep.mubr.bf16.mxu0 0
    %1355 = vmatmul.mubr.bf16.gmra.mrb[0].mxu0 %v1256
    %v1356 = vpop.f32.mrb[0].mxu0
    %v1357 = vadd.f32 0.0, %v1356
    %v1358 = vpop.f32.mrb[0].mxu0
    %v1359 = vpop.f32.mrb[0].mxu0
    %v1360 = vpop.f32.mrb[0].mxu0
    %1361 = vdwg.mxu0
    %v1362 = vadd.f32 %v1255, %v1357
    %v1363 = vpack.c.bf16 %v505, %v505
    %s1364 = scalar_lea.vmem %s5, 512
    %v1365 = vld [vmem:[%s1364] sm:$0xf]
    %v1366 = vld [vmem:[%s1364 + $0x4] sm:$0xf]
    %v1367 = vld [vmem:[%s1364 + $0x8] sm:$0xf]
    %v1368 = vld [vmem:[%s1364 + $0xc] sm:$0xf]
    %v1369 = vld [vmem:[%s1364 + $0x10] sm:$0xf]
    %v1370 = vld [vmem:[%s1364 + $0x14] sm:$0xf]
    %v1371 = vld [vmem:[%s1364 + $0x18] sm:$0xf]
    %v1372 = vld [vmem:[%s1364 + $0x1c] sm:$0xf]
    %v1373 = vld [vmem:[%s1364 + $0x20] sm:$0xf]
    %v1374 = vld [vmem:[%s1364 + $0x24] sm:$0xf]
    %v1375 = vld [vmem:[%s1364 + $0x28] sm:$0xf]
    %v1376 = vld [vmem:[%s1364 + $0x2c] sm:$0xf]
    %v1377 = vld [vmem:[%s1364 + $0x30] sm:$0xf]
    %v1378 = vld [vmem:[%s1364 + $0x34] sm:$0xf]
    %v1379 = vld [vmem:[%s1364 + $0x38] sm:$0xf]
    %v1380 = vld [vmem:[%s1364 + $0x3c] sm:$0xf]
    %v1397 = vunpack.c.l.b16 %v1365
    %v1398 = vunpack.c.l.b16 %v1366
    %v1399 = vunpack.c.l.b16 %v1367
    %v1400 = vunpack.c.l.b16 %v1368
    %v1401 = vunpack.c.l.b16 %v1369
    %v1402 = vunpack.c.l.b16 %v1370
    %v1403 = vunpack.c.l.b16 %v1371
    %v1404 = vunpack.c.l.b16 %v1372
    %v1405 = vunpack.c.l.b16 %v1373
    %v1406 = vunpack.c.l.b16 %v1374
    %v1407 = vunpack.c.l.b16 %v1375
    %v1408 = vunpack.c.l.b16 %v1376
    %v1409 = vunpack.c.l.b16 %v1377
    %v1410 = vunpack.c.l.b16 %v1378
    %v1411 = vunpack.c.l.b16 %v1379
    %v1412 = vunpack.c.l.b16 %v1380
    %v1413 = vpack.c.b16 %v1398, %v1397
    %v1414 = vpack.c.b16 %v1400, %v1399
    %v1415 = vpack.c.b16 %v1402, %v1401
    %v1416 = vpack.c.b16 %v1404, %v1403
    %v1417 = vpack.c.b16 %v1406, %v1405
    %v1418 = vpack.c.b16 %v1408, %v1407
    %v1419 = vpack.c.b16 %v1410, %v1409
    %v1420 = vpack.c.b16 %v1412, %v1411
    %1429 = vmatprep.subr.bf16.mxu0 0
    %1430 = vmatpush1.bf16.msra.mxu0 %v1413
    %1431 = vmatprep.subr.bf16.mxu0 0
    %1432 = vmatpush1.bf16.msra.mxu0 %v1414
    %1433 = vmatprep.subr.bf16.mxu0 0
    %1434 = vmatpush1.bf16.msra.mxu0 %v1415
    %1435 = vmatprep.subr.bf16.mxu0 0
    %1436 = vmatpush1.bf16.msra.mxu0 %v1416
    %1437 = vmatprep.subr.bf16.mxu0 0
    %1438 = vmatpush1.bf16.msra.mxu0 %v1417
    %1439 = vmatprep.subr.bf16.mxu0 0
    %1440 = vmatpush1.bf16.msra.mxu0 %v1418
    %1441 = vmatprep.subr.bf16.mxu0 0
    %1442 = vmatpush1.bf16.msra.mxu0 %v1419
    %1443 = vmatprep.subr.bf16.mxu0 0
    %1444 = vmatpush1.bf16.msra.mxu0 %v1420
    %1445 = vmatprep.subr.bf16.mxu0 0
    %1446 = vmatpush1.bf16.msra.mxu0 0
    %1447 = vmatprep.subr.bf16.mxu0 0
    %1448 = vmatpush1.bf16.msra.mxu0 0
    %1449 = vmatprep.subr.bf16.mxu0 0
    %1450 = vmatpush1.bf16.msra.mxu0 0
    %1451 = vmatprep.subr.bf16.mxu0 0
    %1452 = vmatpush1.bf16.msra.mxu0 0
    %1453 = vmatprep.subr.bf16.mxu0 0
    %1454 = vmatpush1.bf16.msra.mxu0 0
    %1455 = vmatprep.subr.bf16.mxu0 0
    %1456 = vmatpush1.bf16.msra.mxu0 0
    %1457 = vmatprep.subr.bf16.mxu0 0
    %1458 = vmatpush1.bf16.msra.mxu0 0
    %1459 = vmatprep.subr.bf16.mxu0 0
    %1460 = vmatpush1.bf16.msra.mxu0 0
    %1461 = vmatprep.mubr.bf16.mxu0 0
    %1462 = vmatmul.mubr.bf16.gmra.mrb[0].mxu0 %v1363
    %v1463 = vpop.f32.mrb[0].mxu0
    %v1464 = vadd.f32 0.0, %v1463
    %v1465 = vpop.f32.mrb[0].mxu0
    %v1466 = vpop.f32.mrb[0].mxu0
    %v1467 = vpop.f32.mrb[0].mxu0
    %1468 = vdwg.mxu0
    %v1469 = vadd.f32 %v1362, %v1464
    %v1470 = vld [vmem:[%s6] sm:$0x1]
    %v1471 = vld [vmem:[%s7] sm:$0x1]
    %v1472 = vrot.slane %v1469, 4
    %v1473 = vadd.f32 %v1469, %v1472
    %v1474 = vrot.slane %v1473, 2
    %v1475 = vadd.f32 %v1473, %v1474
    %v1476 = vrot.slane %v1475, 1
    %v1477 = vadd.f32 %v1475, %v1476
    %v1478 = vmul.f32 %v1477, 0.125
    %v1479 = vsub.f32 %v1469, %v1478
    %v1480 = vmul.f32 %v1479, %v1479
    %v1481 = vrot.slane %v1480, 4
    %v1482 = vadd.f32 %v1480, %v1481
    %v1483 = vrot.slane %v1482, 2
    %v1484 = vadd.f32 %v1482, %v1483
    %v1485 = vrot.slane %v1484, 1
    %v1486 = vadd.f32 %v1484, %v1485
    %v1487 = vmul.f32 %v1486, 0.125
    %v1488 = vadd.f32 %v1487, 1e-05
    %v1489 = vrsqrt.pop %v1488
    %v1490 = vmul.f32 %v1479, %v1489
    %v1492 = vlaneseq
    %v1493 = vshrl.u32 %v1492, 7
    %v1494 = vsub.s32 0, %v1493
    %v1495 = vrot.slane %v1470, %v1494
    %v1497 = vmul.f32 %v1490, %v1495
    %v1499 = vlaneseq
    %v1500 = vshrl.u32 %v1499, 7
    %v1501 = vsub.s32 0, %v1500
    %v1502 = vrot.slane %v1471, %v1501
    %v1504 = vadd.f32 %v1497, %v1502
    %v1505 = vpack.c.bf16 %v1504, %v1504
    %v1506 = vld [vmem:[%s8] sm:$0xf]
    %v1507 = vld [vmem:[%s8 + $0x4] sm:$0xf]
    %v1508 = vld [vmem:[%s8 + $0x8] sm:$0xf]
    %v1509 = vld [vmem:[%s8 + $0xc] sm:$0xf]
    %v1510 = vld [vmem:[%s8 + $0x10] sm:$0xf]
    %v1511 = vld [vmem:[%s8 + $0x14] sm:$0xf]
    %v1512 = vld [vmem:[%s8 + $0x18] sm:$0xf]
    %v1513 = vld [vmem:[%s8 + $0x1c] sm:$0xf]
    %v1514 = vld [vmem:[%s8 + $0x20] sm:$0xf]
    %v1515 = vld [vmem:[%s8 + $0x24] sm:$0xf]
    %v1516 = vld [vmem:[%s8 + $0x28] sm:$0xf]
    %v1517 = vld [vmem:[%s8 + $0x2c] sm:$0xf]
    %v1518 = vld [vmem:[%s8 + $0x30] sm:$0xf]
    %v1519 = vld [vmem:[%s8 + $0x34] sm:$0xf]
    %v1520 = vld [vmem:[%s8 + $0x38] sm:$0xf]
    %v1521 = vld [vmem:[%s8 + $0x3c] sm:$0xf]
    %v1538 = vunpack.c.l.b16 %v1506
    %v1539 = vunpack.c.l.b16 %v1507
    %v1540 = vunpack.c.l.b16 %v1508
    %v1541 = vunpack.c.l.b16 %v1509
    %v1542 = vunpack.c.l.b16 %v1510
    %v1543 = vunpack.c.l.b16 %v1511
    %v1544 = vunpack.c.l.b16 %v1512
    %v1545 = vunpack.c.l.b16 %v1513
    %v1546 = vunpack.c.l.b16 %v1514
    %v1547 = vunpack.c.l.b16 %v1515
    %v1548 = vunpack.c.l.b16 %v1516
    %v1549 = vunpack.c.l.b16 %v1517
    %v1550 = vunpack.c.l.b16 %v1518
    %v1551 = vunpack.c.l.b16 %v1519
    %v1552 = vunpack.c.l.b16 %v1520
    %v1553 = vunpack.c.l.b16 %v1521
    %v1554 = vpack.c.b16 %v1539, %v1538
    %v1555 = vpack.c.b16 %v1541, %v1540
    %v1556 = vpack.c.b16 %v1543, %v1542
    %v1557 = vpack.c.b16 %v1545, %v1544
    %v1558 = vpack.c.b16 %v1547, %v1546
    %v1559 = vpack.c.b16 %v1549, %v1548
    %v1560 = vpack.c.b16 %v1551, %v1550
    %v1561 = vpack.c.b16 %v1553, %v1552
    %1570 = vmatprep.subr.bf16.mxu0 0
    %1571 = vmatpush1.bf16.msra.mxu0 %v1554
    %1572 = vmatprep.subr.bf16.mxu0 0
    %1573 = vmatpush1.bf16.msra.mxu0 %v1555
    %1574 = vmatprep.subr.bf16.mxu0 0
    %1575 = vmatpush1.bf16.msra.mxu0 %v1556
    %1576 = vmatprep.subr.bf16.mxu0 0
    %1577 = vmatpush1.bf16.msra.mxu0 %v1557
    %1578 = vmatprep.subr.bf16.mxu0 0
    %1579 = vmatpush1.bf16.msra.mxu0 %v1558
    %1580 = vmatprep.subr.bf16.mxu0 0
    %1581 = vmatpush1.bf16.msra.mxu0 %v1559
    %1582 = vmatprep.subr.bf16.mxu0 0
    %1583 = vmatpush1.bf16.msra.mxu0 %v1560
    %1584 = vmatprep.subr.bf16.mxu0 0
    %1585 = vmatpush1.bf16.msra.mxu0 %v1561
    %1586 = vmatprep.subr.bf16.mxu0 0
    %1587 = vmatpush1.bf16.msra.mxu0 0
    %1588 = vmatprep.subr.bf16.mxu0 0
    %1589 = vmatpush1.bf16.msra.mxu0 0
    %1590 = vmatprep.subr.bf16.mxu0 0
    %1591 = vmatpush1.bf16.msra.mxu0 0
    %1592 = vmatprep.subr.bf16.mxu0 0
    %1593 = vmatpush1.bf16.msra.mxu0 0
    %1594 = vmatprep.subr.bf16.mxu0 0
    %1595 = vmatpush1.bf16.msra.mxu0 0
    %1596 = vmatprep.subr.bf16.mxu0 0
    %1597 = vmatpush1.bf16.msra.mxu0 0
    %1598 = vmatprep.subr.bf16.mxu0 0
    %1599 = vmatpush1.bf16.msra.mxu0 0
    %1600 = vmatprep.subr.bf16.mxu0 0
    %1601 = vmatpush1.bf16.msra.mxu0 0
    %1602 = vmatprep.mubr.bf16.mxu0 0
    %1603 = vmatmul.mubr.bf16.gmra.mrb[0].mxu0 %v1505
    %v1604 = vpop.f32.mrb[0].mxu0
    %v1605 = vadd.f32 0.0, %v1604
    %v1606 = vpop.f32.mrb[0].mxu0
    %v1607 = vpop.f32.mrb[0].mxu0
    %v1608 = vpop.f32.mrb[0].mxu0
    %1609 = vdwg.mxu0
    %1610 = vst [vmem:[#allocation2] sm:$0xff] %v1605
    // Predicated region
    $region38: #{fpn_forward.1} parent=1 // pred_check
      _
    $region39: #{fpn_forward.1} parent=1 // pred_check_branch
      %1612 = sbr.rel (0) target = $region41
    $region40: #{fpn_forward.1} parent=1 // pred_region
      %s1614 = ssub.s32 128, 128
      %1615 = vsyncadd [#allocation3], %s1614
      %s1617 = sshll.u32 [#allocation2], 4
      %s1618 = int_to_ptr.vmem [resolvable:$true] %s1617
      %1620 = dma.vmem_to_hbm [thread:$0]  %s1618, 128, %s9, [#allocation3]
    $region41: #{fpn_forward.1} parent=1 // pred_fallthru
      _
    // Predicated region
    $region42: #{fpn_forward.1} parent=1 // pred_check
      _
    $region43: #{fpn_forward.1} parent=1 // pred_check_branch
      %1622 = sbr.rel (0) target = $region45
    $region44: #{fpn_forward.1} parent=1 // pred_region
      %1623 = dma.done [#allocation3], 128
    $region45: #{fpn_forward.1} parent=1 // pred_fallthru
      _
    %1624 = vsyncpa [#allocation3], 1

</llo_original>
